<compile_context>
chip_gen: v5e
topology: v5e:2x2
jax: 0.10.0
libtpu: 0.0.40
codegen_flags: <defaults>
</compile_context>

<pallas_src>
import jax
import jax.numpy as jnp
import numpy as np
from jax.experimental import pallas as pl
from jax.experimental.pallas import tpu as pltpu


# ----------------------------------------------------------------------------
# Fused whole-net kernel: one grid step = one (padded) pedestrian segment.
# ----------------------------------------------------------------------------
def _make_gat_net_kernel(layer_cfgs):
    """layer_cfgs: tuple of (n_head, f_out) per GAT layer (static)."""
    n_layer = len(layer_cfgs)

    def kernel(len_ref, x_ref, *refs):
        out_ref = refs[-1]
        w_refs = refs[:-1]                        # [w_fused_0, bias_0, w_fused_1, bias_1, ...]

        s = pl.program_id(0)
        n_valid = len_ref[s]                      # actual #nodes in this segment

        x = x_ref[0].astype(jnp.float32)          # (T, n_pad, f_in)
        T, n, _ = x.shape

        node_ids_col = jax.lax.broadcasted_iota(jnp.int32, (n, 1), 0)
        node_ids_row = jax.lax.broadcasted_iota(jnp.int32, (1, n), 1)
        node_mask = (node_ids_col < n_valid).astype(jnp.float32)    # (n, 1)
        key_mask = node_ids_row < n_valid                           # (1, n)
        inv_nv = 1.0 / n_valid.astype(jnp.float32)
        ones_col = jnp.ones((T, n, 1), jnp.float32)

        for li, (n_head, f_out) in enumerate(layer_cfgs):
            w = w_refs[2 * li][...]               # (f_in_l, H*f_out + 2H)
            bias = w_refs[2 * li + 1][...]        # (1, H*f_out)

            # ---- masked InstanceNorm1d: normalize over nodes per feature ----
            xm = x * node_mask
            mean = jnp.sum(xm, axis=1, keepdims=True) * inv_nv      # (T,1,f)
            diff = (x - mean) * node_mask
            var = jnp.sum(diff * diff, axis=1, keepdims=True) * inv_nv
            xn = (x - mean) * jax.lax.rsqrt(var + 1e-5)             # (T,n,f)

            # ---- fused projection: all heads + src/dst scores in one matmul ----
            f_in_l = xn.shape[-1]
            cols = n_head * f_out + 2 * n_head
            hp_ext = jnp.dot(xn.reshape(T * n, f_in_l), w,
                             preferred_element_type=jnp.float32)
            hp_ext = hp_ext.reshape(T, n, cols)

            head_outs = []
            for h in range(n_head):               # static unroll (H <= 4)
                hp_h = hp_ext[:, :, h * f_out:(h + 1) * f_out]      # (T,n,f_out)
                src_h = hp_ext[:, :, n_head * f_out + h:
                               n_head * f_out + h + 1]              # (T,n,1)
                dst_h = hp_ext[:, :, n_head * f_out + n_head + h:
                               n_head * f_out + n_head + h + 1]     # (T,n,1)

                # logits[t,i,j] = src[t,i] + dst[t,j], built with a rank-2
                # batched matmul (avoids an explicit sublane->lane transpose).
                a_mat = jnp.concatenate([src_h, ones_col], axis=-1)  # (T,n,2)
                b_mat = jnp.concatenate([ones_col, dst_h], axis=-1)  # (T,n,2)
                logits = jnp.einsum('tic,tjc->tij', a_mat, b_mat,
                                    preferred_element_type=jnp.float32)
                logits = jnp.where(logits >= 0, logits, 0.2 * logits)  # LeakyReLU(0.2)
                logits = jnp.where(key_mask, logits, -1e30)            # mask padded dst

                logits = logits - jnp.max(logits, axis=-1, keepdims=True)
                e = jnp.exp(logits)
                attn = e / jnp.sum(e, axis=-1, keepdims=True)           # (T,n,n)
                # TODO(synk): attention dropout is identity in eval mode.

                head_outs.append(
                    jnp.einsum('tij,tjo->tio', attn, hp_h,
                               preferred_element_type=jnp.float32))     # (T,n,f_out)

            y = (head_outs[0] if n_head == 1
                 else jnp.concatenate(head_outs, axis=-1)) + bias       # (T,n,H*f_out)

            if li + 1 < n_layer:
                # head-concat is already lane-dense -> ELU; dropout = identity.
                x = jnp.where(y > 0, y, jnp.exp(jnp.minimum(y, 0.0)) - 1.0)
            else:
                x = y                              # last layer (1 head) == squeeze(dim=1)

        out_ref[0] = x.astype(out_ref.dtype)

    return kernel


# ----------------------------------------------------------------------------
# Wrapper: fuse per-layer parameters, pad & stack segments, one pallas_call.
# ----------------------------------------------------------------------------
def _fuse_layer_params(p):
    w = p['w']                                    # (H, f_in, f_out)
    a_src = p['a_src'][:, 0, :]                   # (H, f_out)
    a_dst = p['a_dst'][:, 0, :]
    n_head, f_in, f_out = w.shape
    w_cat = jnp.transpose(w, (1, 0, 2)).reshape(f_in, n_head * f_out)
    wa_src = jnp.einsum('hfo,ho->fh', w, a_src)   # (f_in, H): W_h @ a_src_h
    wa_dst = jnp.einsum('hfo,ho->fh', w, a_dst)
    w_fused = jnp.concatenate([w_cat, wa_src, wa_dst], axis=1)  # (f_in, H*f_out+2H)
    bias = jnp.tile(p['bias'].reshape(1, f_out), (1, n_head))   # (1, H*f_out)
    return w_fused, bias


def gat_encoder_forward(obs_traj_embedding, seq_start_end, params):
    """obs_traj_embedding: (T, N_total, F); seq_start_end: list of (start, end)."""
    T, _, f_in0 = obs_traj_embedding.shape
    lens = [int(e) - int(s) for s, e in seq_start_end]
    n_seg = len(lens)
    n_pad = max(8, ((max(lens) + 7) // 8) * 8)    # sublane-aligned node count

    segs = []
    for (s, e), ln in zip(seq_start_end, lens):
        seg = obs_traj_embedding[:, int(s):int(e), :]
        segs.append(jnp.pad(seg, ((0, 0), (0, n_pad - ln), (0, 0))))
    x = jnp.stack(segs, axis=0)                   # (S, T, n_pad, F)
    lengths = jnp.asarray(lens, dtype=jnp.int32)  # scalar-prefetched to SMEM

    layer_cfgs = tuple((p['w'].shape[0], p['w'].shape[2]) for p in params)
    assert layer_cfgs[-1][0] == 1, "last GAT layer must have 1 head (squeeze(dim=1))"
    f_final = layer_cfgs[-1][1]

    fused = [_fuse_layer_params(p) for p in params]
    operands = [x]
    in_specs = [pl.BlockSpec((1, T, n_pad, f_in0), lambda s, lens: (s, 0, 0, 0))]
    for w_f, b_f in fused:
        in_specs.append(pl.BlockSpec(w_f.shape, lambda s, lens: (0, 0)))
        in_specs.append(pl.BlockSpec(b_f.shape, lambda s, lens: (0, 0)))
        operands += [w_f, b_f]

    out = pl.pallas_call(
        _make_gat_net_kernel(layer_cfgs),
        out_shape=jax.ShapeDtypeStruct((n_seg, T, n_pad, f_final), jnp.float32),
        grid_spec=pltpu.PrefetchScalarGridSpec(
            num_scalar_prefetch=1,
            grid=(n_seg,),
            in_specs=in_specs,
            out_specs=pl.BlockSpec((1, T, n_pad, f_final),
                                   lambda s, lens: (s, 0, 0, 0)),
        ),
        compiler_params=pltpu.CompilerParams(dimension_semantics=("parallel",)),
    )(lengths, *operands)

    pieces = [out[i, :, :ln, :] for i, ln in enumerate(lens)]
    return jnp.concatenate(pieces, axis=1)        # (T, N_total, f_final)


# ----------------------------------------------------------------------------
# Pure-JAX reference (unpadded, per segment) for the correctness check.
# ----------------------------------------------------------------------------
def _gat_forward_ref(x, params):
    T, n, _ = x.shape
    n_layer = len(params)
    for i, p in enumerate(params):
        mean = jnp.mean(x, axis=1, keepdims=True)
        var = jnp.mean(jnp.square(x - mean), axis=1, keepdims=True)
        xn = (x - mean) / jnp.sqrt(var + 1e-5)
        hp = jnp.einsum('bnf,hfo->bhno', xn, p['w'],
                        precision=jax.lax.Precision.HIGHEST)
        src = jnp.einsum('bhno,ho->bhn', hp, p['a_src'][:, 0, :],
                         precision=jax.lax.Precision.HIGHEST)
        dst = jnp.einsum('bhno,ho->bhn', hp, p['a_dst'][:, 0, :],
                         precision=jax.lax.Precision.HIGHEST)
        logits = src[..., :, None] + dst[..., None, :]
        logits = jnp.where(logits >= 0, logits, 0.2 * logits)
        attn = jax.nn.softmax(logits, axis=-1)
        x = jnp.einsum('bhij,bhjo->bhio', attn, hp,
                       precision=jax.lax.Precision.HIGHEST) + p['bias'][0]
        if i + 1 == n_layer:
            x = x[:, 0] if x.shape[1] == 1 else x
        else:
            x = jnp.transpose(x, (0, 2, 1, 3)).reshape(T, n, -1)
            x = jax.nn.elu(x)
    return x


def _gat_encoder_ref(obs, seq_start_end, params):
    return jnp.concatenate(
        [_gat_forward_ref(obs[:, s:e, :], params) for s, e in seq_start_end],
        axis=1)


# ----------------------------------------------------------------------------
# Deterministic parameter init (matches module __init__ shapes)
# ----------------------------------------------------------------------------
def _xavier_uniform(key, shape, gain):
    fan_in = shape[1] * (shape[2] if len(shape) > 2 else 1)
    fan_out = shape[0] * (shape[2] if len(shape) > 2 else 1)
    bound = gain * (6.0 / (fan_in + fan_out)) ** 0.5
    return jax.random.uniform(key, shape, jnp.float32, -bound, bound)


def init_gat_params(key, n_units, n_heads):
    n_layer = len(n_units) - 1
    params = []
    for i in range(n_layer):
        f_in = n_units[i] * n_heads[i - 1] if i else n_units[i]
        f_out = n_units[i + 1]
        nh = n_heads[i]
        key, k1, k2, k3 = jax.random.split(key, 4)
        w = _xavier_uniform(k1, (nh, f_in, f_out), 1.414)
        a_src = _xavier_uniform(k2, (nh, f_out, 1), 1.414)
        a_dst = _xavier_uniform(k3, (nh, f_out, 1), 1.414)
        params.append(dict(
            w=w,
            a_src=jnp.transpose(a_src, (0, 2, 1)),   # (H, 1, f_out)
            a_dst=jnp.transpose(a_dst, (0, 2, 1)),
            bias=jnp.zeros((1, f_out), jnp.float32),
        ))
    return params


# ----------------------------------------------------------------------------
if __name__ == "__main__":
    key = jax.random.PRNGKey(0)

    # GATEncoder(n_units=[16,16,16], n_heads=[4,1], dropout=0.2, alpha=0.2)
    n_units = [16, 16, 16]
    n_heads = [4, 1]

    T, N_total, F = 4, 8, 16                     # time steps, total peds, h_dim
    key, kx, kp = jax.random.split(key, 3)
    obs_traj_embedding = jax.random.normal(kx, (T, N_total, F), jnp.float32)
    seq_start_end = [(0, 3), (3, 8)]             # two pedestrian segments

    params = init_gat_params(kp, n_units, n_heads)

    out = gat_encoder_forward(obs_traj_embedding, seq_start_end, params)
    out = jax.block_until_ready(out)

    ref = jax.block_until_ready(
        _gat_encoder_ref(obs_traj_embedding, seq_start_end, params))

    assert out.shape == (T, N_total, n_units[-1]), out.shape
    np.testing.assert_allclose(np.asarray(out), np.asarray(ref),
                               atol=5e-2, rtol=5e-2)
    print("KERNEL_OK")
</pallas_src>

<mosaic_0001>
module attributes {stable_mosaic.version = 11 : i64} {
  func.func @kernel(%arg0: i32, %arg1: memref<2xi32, #tpu.memory_space<smem>>, %arg2: memref<1x4x8x16xf32, #tpu.memory_space<vmem>>, %arg3: memref<16x72xf32, #tpu.memory_space<vmem>>, %arg4: memref<1x64xf32, #tpu.memory_space<vmem>>, %arg5: memref<64x18xf32, #tpu.memory_space<vmem>>, %arg6: memref<1x16xf32, #tpu.memory_space<vmem>>, %arg7: memref<1x4x8x16xf32, #tpu.memory_space<vmem>>) attributes {dimension_semantics = [#tpu.dimension_semantics<parallel>], iteration_bounds = array<i64: 2>, scalar_prefetch = 1 : i64, scratch_operands = 0 : i64, tpu.core_type = #tpu.core_type<tc>, window_params = [{transform_indices = @transform_0, window_bounds = array<i64: 1, 4, 8, 16>}, {pipeline_mode = #tpu.pipeline_mode<synchronous>, transform_indices = @transform_1, window_bounds = array<i64: 16, 72>}, {pipeline_mode = #tpu.pipeline_mode<synchronous>, transform_indices = @transform_2, window_bounds = array<i64: 1, 64>}, {pipeline_mode = #tpu.pipeline_mode<synchronous>, transform_indices = @transform_3, window_bounds = array<i64: 64, 18>}, {pipeline_mode = #tpu.pipeline_mode<synchronous>, transform_indices = @transform_4, window_bounds = array<i64: 1, 16>}, {transform_indices = @transform_5, window_bounds = array<i64: 1, 4, 8, 16>}]} {
    %0 = arith.index_cast %arg0 : i32 to index
    %1 = memref.load %arg1[%0] : memref<2xi32, #tpu.memory_space<smem>>
    %c0 = arith.constant 0 : index
    %c0_0 = arith.constant 0 : index
    %c0_1 = arith.constant 0 : index
    %c0_2 = arith.constant 0 : index
    %2 = vector.load %arg2[%c0, %c0_0, %c0_1, %c0_2] : memref<1x4x8x16xf32, #tpu.memory_space<vmem>>, vector<1x4x8x16xf32>
    %3 = vector.shape_cast %2 : vector<1x4x8x16xf32> to vector<4x8x16xf32>
    %4 = tpu.iota {dimensions = array<i32: 0>} : vector<8x1xi32>
    %5 = tpu.iota {dimensions = array<i32: 1>} : vector<1x8xi32>
    %6 = vector.broadcast %1 : i32 to vector<8x1xi32>
    %7 = arith.cmpi slt, %4, %6 : vector<8x1xi32>
    %8 = arith.extui %7 : vector<8x1xi1> to vector<8x1xi32>
    %9 = arith.sitofp %8 : vector<8x1xi32> to vector<8x1xf32>
    %10 = vector.broadcast %1 : i32 to vector<1x8xi32>
    %11 = arith.cmpi slt, %5, %10 : vector<1x8xi32>
    %12 = arith.sitofp %1 : i32 to f32
    %cst = arith.constant 1.000000e+00 : f32
    %13 = arith.divf %cst, %12 : f32
    %cst_3 = arith.constant 1.000000e+00 : f32
    %14 = vector.broadcast %cst_3 : f32 to vector<4x8x1xf32>
    %c0_4 = arith.constant 0 : index
    %c0_5 = arith.constant 0 : index
    %15 = vector.load %arg3[%c0_4, %c0_5] : memref<16x72xf32, #tpu.memory_space<vmem>>, vector<16x72xf32>
    %c0_6 = arith.constant 0 : index
    %c0_7 = arith.constant 0 : index
    %16 = vector.load %arg4[%c0_6, %c0_7] : memref<1x64xf32, #tpu.memory_space<vmem>>, vector<1x64xf32>
    %17 = vector.shape_cast %9 : vector<8x1xf32> to vector<1x8x1xf32>
    %18 = vector.broadcast %17 : vector<1x8x1xf32> to vector<4x8x16xf32>
    %19 = arith.mulf %3, %18 : vector<4x8x16xf32>
    %cst_8 = arith.constant dense<0.000000e+00> : vector<4x16xf32>
    %20 = vector.multi_reduction <add>, %19, %cst_8 [1] : vector<4x8x16xf32> to vector<4x16xf32>
    %21 = vector.shape_cast %20 : vector<4x16xf32> to vector<4x1x16xf32>
    %22 = vector.broadcast %13 : f32 to vector<4x1x16xf32>
    %23 = arith.mulf %21, %22 : vector<4x1x16xf32>
    %24 = vector.broadcast %23 : vector<4x1x16xf32> to vector<4x8x16xf32>
    %25 = arith.subf %3, %24 : vector<4x8x16xf32>
    %26 = vector.shape_cast %9 : vector<8x1xf32> to vector<1x8x1xf32>
    %27 = vector.broadcast %26 : vector<1x8x1xf32> to vector<4x8x16xf32>
    %28 = arith.mulf %25, %27 : vector<4x8x16xf32>
    %29 = arith.mulf %28, %28 : vector<4x8x16xf32>
    %cst_9 = arith.constant dense<0.000000e+00> : vector<4x16xf32>
    %30 = vector.multi_reduction <add>, %29, %cst_9 [1] : vector<4x8x16xf32> to vector<4x16xf32>
    %31 = vector.shape_cast %30 : vector<4x16xf32> to vector<4x1x16xf32>
    %32 = vector.broadcast %13 : f32 to vector<4x1x16xf32>
    %33 = arith.mulf %31, %32 : vector<4x1x16xf32>
    %34 = vector.broadcast %23 : vector<4x1x16xf32> to vector<4x8x16xf32>
    %35 = arith.subf %3, %34 : vector<4x8x16xf32>
    %cst_10 = arith.constant 9.99999974E-6 : f32
    %36 = vector.broadcast %cst_10 : f32 to vector<4x1x16xf32>
    %37 = arith.addf %33, %36 : vector<4x1x16xf32>
    %38 = math.rsqrt %37 : vector<4x1x16xf32>
    %39 = vector.broadcast %38 : vector<4x1x16xf32> to vector<4x8x16xf32>
    %40 = arith.mulf %35, %39 : vector<4x8x16xf32>
    %41 = vector.shape_cast %40 : vector<4x8x16xf32> to vector<32x16xf32>
    %cst_11 = arith.constant dense<0.000000e+00> : vector<32x72xf32>
    %42 = tpu.matmul %41, %15, %cst_11 {dimension_numbers = #tpu.dot_dimension_numbers<[1], [0], [0], [1], [0, 0, 1, 1], [], []>} : vector<32x16xf32>, vector<16x72xf32>, vector<32x72xf32> -> vector<32x72xf32>
    %43 = vector.shape_cast %42 : vector<32x72xf32> to vector<4x8x72xf32>
    %44 = vector.extract_strided_slice %43 {offsets = [0, 0, 0], sizes = [4, 8, 16], strides = [1, 1, 1]} : vector<4x8x72xf32> to vector<4x8x16xf32>
    %45 = vector.extract_strided_slice %43 {offsets = [0, 0, 64], sizes = [4, 8, 1], strides = [1, 1, 1]} : vector<4x8x72xf32> to vector<4x8x1xf32>
    %46 = vector.extract_strided_slice %43 {offsets = [0, 0, 68], sizes = [4, 8, 1], strides = [1, 1, 1]} : vector<4x8x72xf32> to vector<4x8x1xf32>
    %47 = tpu.concatenate %45, %14 in 2 : vector<4x8x1xf32>, vector<4x8x1xf32> -> vector<4x8x2xf32>
    %48 = tpu.concatenate %14, %46 in 2 : vector<4x8x1xf32>, vector<4x8x1xf32> -> vector<4x8x2xf32>
    "tpu.trace_start"() <{level = 10 : i32, message = "tic,tjc->tij"}> : () -> ()
    %cst_12 = arith.constant dense<0.000000e+00> : vector<4x8x8xf32>
    %49 = tpu.matmul %47, %48, %cst_12 {dimension_numbers = #tpu.dot_dimension_numbers<[2], [2], [1], [1], [0, 0, 0, 1, 1, 1], [0], [0]>} : vector<4x8x2xf32>, vector<4x8x2xf32>, vector<4x8x8xf32> -> vector<4x8x8xf32>
    %cst_13 = arith.constant 0.000000e+00 : f32
    "tpu.trace_stop"() : () -> ()
    %50 = vector.broadcast %cst_13 : f32 to vector<4x8x8xf32>
    %51 = arith.cmpf oge, %49, %50 : vector<4x8x8xf32>
    %cst_14 = arith.constant 2.000000e-01 : f32
    %52 = vector.broadcast %cst_14 : f32 to vector<4x8x8xf32>
    %53 = arith.mulf %52, %49 : vector<4x8x8xf32>
    %54 = arith.select %51, %49, %53 : vector<4x8x8xi1>, vector<4x8x8xf32>
    %cst_15 = arith.constant -1.000000e+30 : f32
    %55 = vector.shape_cast %11 : vector<1x8xi1> to vector<1x1x8xi1>
    %56 = vector.broadcast %55 : vector<1x1x8xi1> to vector<4x8x8xi1>
    %57 = vector.broadcast %cst_15 : f32 to vector<4x8x8xf32>
    %58 = arith.select %56, %54, %57 : vector<4x8x8xi1>, vector<4x8x8xf32>
    %cst_16 = arith.constant dense<0xFF800000> : vector<4x8xf32>
    %59 = vector.multi_reduction <maximumf>, %58, %cst_16 [2] : vector<4x8x8xf32> to vector<4x8xf32>
    %60 = vector.shape_cast %59 : vector<4x8xf32> to vector<4x8x1xf32>
    %61 = vector.broadcast %60 : vector<4x8x1xf32> to vector<4x8x8xf32>
    %62 = arith.subf %58, %61 : vector<4x8x8xf32>
    %63 = math.exp %62 : vector<4x8x8xf32>
    %cst_17 = arith.constant dense<0.000000e+00> : vector<4x8xf32>
    %64 = vector.multi_reduction <add>, %63, %cst_17 [2] : vector<4x8x8xf32> to vector<4x8xf32>
    %65 = vector.shape_cast %64 : vector<4x8xf32> to vector<4x8x1xf32>
    %66 = vector.broadcast %65 : vector<4x8x1xf32> to vector<4x8x8xf32>
    %67 = arith.divf %63, %66 : vector<4x8x8xf32>
    "tpu.trace_start"() <{level = 10 : i32, message = "tij,tjo->tio"}> : () -> ()
    %cst_18 = arith.constant dense<0.000000e+00> : vector<4x8x16xf32>
    %68 = tpu.matmul %67, %44, %cst_18 {dimension_numbers = #tpu.dot_dimension_numbers<[2], [1], [1], [2], [0, 0, 0, 1, 1, 2], [0], [0]>} : vector<4x8x8xf32>, vector<4x8x16xf32>, vector<4x8x16xf32> -> vector<4x8x16xf32>
    "tpu.trace_stop"() : () -> ()
    %69 = vector.extract_strided_slice %43 {offsets = [0, 0, 16], sizes = [4, 8, 16], strides = [1, 1, 1]} : vector<4x8x72xf32> to vector<4x8x16xf32>
    %70 = vector.extract_strided_slice %43 {offsets = [0, 0, 65], sizes = [4, 8, 1], strides = [1, 1, 1]} : vector<4x8x72xf32> to vector<4x8x1xf32>
    %71 = vector.extract_strided_slice %43 {offsets = [0, 0, 69], sizes = [4, 8, 1], strides = [1, 1, 1]} : vector<4x8x72xf32> to vector<4x8x1xf32>
    %72 = tpu.concatenate %70, %14 in 2 : vector<4x8x1xf32>, vector<4x8x1xf32> -> vector<4x8x2xf32>
    %73 = tpu.concatenate %14, %71 in 2 : vector<4x8x1xf32>, vector<4x8x1xf32> -> vector<4x8x2xf32>
    "tpu.trace_start"() <{level = 10 : i32, message = "tic,tjc->tij"}> : () -> ()
    %cst_19 = arith.constant dense<0.000000e+00> : vector<4x8x8xf32>
    %74 = tpu.matmul %72, %73, %cst_19 {dimension_numbers = #tpu.dot_dimension_numbers<[2], [2], [1], [1], [0, 0, 0, 1, 1, 1], [0], [0]>} : vector<4x8x2xf32>, vector<4x8x2xf32>, vector<4x8x8xf32> -> vector<4x8x8xf32>
    %cst_20 = arith.constant 0.000000e+00 : f32
    "tpu.trace_stop"() : () -> ()
    %75 = vector.broadcast %cst_20 : f32 to vector<4x8x8xf32>
    %76 = arith.cmpf oge, %74, %75 : vector<4x8x8xf32>
    %cst_21 = arith.constant 2.000000e-01 : f32
    %77 = vector.broadcast %cst_21 : f32 to vector<4x8x8xf32>
    %78 = arith.mulf %77, %74 : vector<4x8x8xf32>
    %79 = arith.select %76, %74, %78 : vector<4x8x8xi1>, vector<4x8x8xf32>
    %cst_22 = arith.constant -1.000000e+30 : f32
    %80 = vector.shape_cast %11 : vector<1x8xi1> to vector<1x1x8xi1>
    %81 = vector.broadcast %80 : vector<1x1x8xi1> to vector<4x8x8xi1>
    %82 = vector.broadcast %cst_22 : f32 to vector<4x8x8xf32>
    %83 = arith.select %81, %79, %82 : vector<4x8x8xi1>, vector<4x8x8xf32>
    %cst_23 = arith.constant dense<0xFF800000> : vector<4x8xf32>
    %84 = vector.multi_reduction <maximumf>, %83, %cst_23 [2] : vector<4x8x8xf32> to vector<4x8xf32>
    %85 = vector.shape_cast %84 : vector<4x8xf32> to vector<4x8x1xf32>
    %86 = vector.broadcast %85 : vector<4x8x1xf32> to vector<4x8x8xf32>
    %87 = arith.subf %83, %86 : vector<4x8x8xf32>
    %88 = math.exp %87 : vector<4x8x8xf32>
    %cst_24 = arith.constant dense<0.000000e+00> : vector<4x8xf32>
    %89 = vector.multi_reduction <add>, %88, %cst_24 [2] : vector<4x8x8xf32> to vector<4x8xf32>
    %90 = vector.shape_cast %89 : vector<4x8xf32> to vector<4x8x1xf32>
    %91 = vector.broadcast %90 : vector<4x8x1xf32> to vector<4x8x8xf32>
    %92 = arith.divf %88, %91 : vector<4x8x8xf32>
    "tpu.trace_start"() <{level = 10 : i32, message = "tij,tjo->tio"}> : () -> ()
    %cst_25 = arith.constant dense<0.000000e+00> : vector<4x8x16xf32>
    %93 = tpu.matmul %92, %69, %cst_25 {dimension_numbers = #tpu.dot_dimension_numbers<[2], [1], [1], [2], [0, 0, 0, 1, 1, 2], [0], [0]>} : vector<4x8x8xf32>, vector<4x8x16xf32>, vector<4x8x16xf32> -> vector<4x8x16xf32>
    "tpu.trace_stop"() : () -> ()
    %94 = vector.extract_strided_slice %43 {offsets = [0, 0, 32], sizes = [4, 8, 16], strides = [1, 1, 1]} : vector<4x8x72xf32> to vector<4x8x16xf32>
    %95 = vector.extract_strided_slice %43 {offsets = [0, 0, 66], sizes = [4, 8, 1], strides = [1, 1, 1]} : vector<4x8x72xf32> to vector<4x8x1xf32>
    %96 = vector.extract_strided_slice %43 {offsets = [0, 0, 70], sizes = [4, 8, 1], strides = [1, 1, 1]} : vector<4x8x72xf32> to vector<4x8x1xf32>
    %97 = tpu.concatenate %95, %14 in 2 : vector<4x8x1xf32>, vector<4x8x1xf32> -> vector<4x8x2xf32>
    %98 = tpu.concatenate %14, %96 in 2 : vector<4x8x1xf32>, vector<4x8x1xf32> -> vector<4x8x2xf32>
    "tpu.trace_start"() <{level = 10 : i32, message = "tic,tjc->tij"}> : () -> ()
    %cst_26 = arith.constant dense<0.000000e+00> : vector<4x8x8xf32>
    %99 = tpu.matmul %97, %98, %cst_26 {dimension_numbers = #tpu.dot_dimension_numbers<[2], [2], [1], [1], [0, 0, 0, 1, 1, 1], [0], [0]>} : vector<4x8x2xf32>, vector<4x8x2xf32>, vector<4x8x8xf32> -> vector<4x8x8xf32>
    %cst_27 = arith.constant 0.000000e+00 : f32
    "tpu.trace_stop"() : () -> ()
    %100 = vector.broadcast %cst_27 : f32 to vector<4x8x8xf32>
    %101 = arith.cmpf oge, %99, %100 : vector<4x8x8xf32>
    %cst_28 = arith.constant 2.000000e-01 : f32
    %102 = vector.broadcast %cst_28 : f32 to vector<4x8x8xf32>
    %103 = arith.mulf %102, %99 : vector<4x8x8xf32>
    %104 = arith.select %101, %99, %103 : vector<4x8x8xi1>, vector<4x8x8xf32>
    %cst_29 = arith.constant -1.000000e+30 : f32
    %105 = vector.shape_cast %11 : vector<1x8xi1> to vector<1x1x8xi1>
    %106 = vector.broadcast %105 : vector<1x1x8xi1> to vector<4x8x8xi1>
    %107 = vector.broadcast %cst_29 : f32 to vector<4x8x8xf32>
    %108 = arith.select %106, %104, %107 : vector<4x8x8xi1>, vector<4x8x8xf32>
    %cst_30 = arith.constant dense<0xFF800000> : vector<4x8xf32>
    %109 = vector.multi_reduction <maximumf>, %108, %cst_30 [2] : vector<4x8x8xf32> to vector<4x8xf32>
    %110 = vector.shape_cast %109 : vector<4x8xf32> to vector<4x8x1xf32>
    %111 = vector.broadcast %110 : vector<4x8x1xf32> to vector<4x8x8xf32>
    %112 = arith.subf %108, %111 : vector<4x8x8xf32>
    %113 = math.exp %112 : vector<4x8x8xf32>
    %cst_31 = arith.constant dense<0.000000e+00> : vector<4x8xf32>
    %114 = vector.multi_reduction <add>, %113, %cst_31 [2] : vector<4x8x8xf32> to vector<4x8xf32>
    %115 = vector.shape_cast %114 : vector<4x8xf32> to vector<4x8x1xf32>
    %116 = vector.broadcast %115 : vector<4x8x1xf32> to vector<4x8x8xf32>
    %117 = arith.divf %113, %116 : vector<4x8x8xf32>
    "tpu.trace_start"() <{level = 10 : i32, message = "tij,tjo->tio"}> : () -> ()
    %cst_32 = arith.constant dense<0.000000e+00> : vector<4x8x16xf32>
    %118 = tpu.matmul %117, %94, %cst_32 {dimension_numbers = #tpu.dot_dimension_numbers<[2], [1], [1], [2], [0, 0, 0, 1, 1, 2], [0], [0]>} : vector<4x8x8xf32>, vector<4x8x16xf32>, vector<4x8x16xf32> -> vector<4x8x16xf32>
    "tpu.trace_stop"() : () -> ()
    %119 = vector.extract_strided_slice %43 {offsets = [0, 0, 48], sizes = [4, 8, 16], strides = [1, 1, 1]} : vector<4x8x72xf32> to vector<4x8x16xf32>
    %120 = vector.extract_strided_slice %43 {offsets = [0, 0, 67], sizes = [4, 8, 1], strides = [1, 1, 1]} : vector<4x8x72xf32> to vector<4x8x1xf32>
    %121 = vector.extract_strided_slice %43 {offsets = [0, 0, 71], sizes = [4, 8, 1], strides = [1, 1, 1]} : vector<4x8x72xf32> to vector<4x8x1xf32>
    %122 = tpu.concatenate %120, %14 in 2 : vector<4x8x1xf32>, vector<4x8x1xf32> -> vector<4x8x2xf32>
    %123 = tpu.concatenate %14, %121 in 2 : vector<4x8x1xf32>, vector<4x8x1xf32> -> vector<4x8x2xf32>
    "tpu.trace_start"() <{level = 10 : i32, message = "tic,tjc->tij"}> : () -> ()
    %cst_33 = arith.constant dense<0.000000e+00> : vector<4x8x8xf32>
    %124 = tpu.matmul %122, %123, %cst_33 {dimension_numbers = #tpu.dot_dimension_numbers<[2], [2], [1], [1], [0, 0, 0, 1, 1, 1], [0], [0]>} : vector<4x8x2xf32>, vector<4x8x2xf32>, vector<4x8x8xf32> -> vector<4x8x8xf32>
    %cst_34 = arith.constant 0.000000e+00 : f32
    "tpu.trace_stop"() : () -> ()
    %125 = vector.broadcast %cst_34 : f32 to vector<4x8x8xf32>
    %126 = arith.cmpf oge, %124, %125 : vector<4x8x8xf32>
    %cst_35 = arith.constant 2.000000e-01 : f32
    %127 = vector.broadcast %cst_35 : f32 to vector<4x8x8xf32>
    %128 = arith.mulf %127, %124 : vector<4x8x8xf32>
    %129 = arith.select %126, %124, %128 : vector<4x8x8xi1>, vector<4x8x8xf32>
    %cst_36 = arith.constant -1.000000e+30 : f32
    %130 = vector.shape_cast %11 : vector<1x8xi1> to vector<1x1x8xi1>
    %131 = vector.broadcast %130 : vector<1x1x8xi1> to vector<4x8x8xi1>
    %132 = vector.broadcast %cst_36 : f32 to vector<4x8x8xf32>
    %133 = arith.select %131, %129, %132 : vector<4x8x8xi1>, vector<4x8x8xf32>
    %cst_37 = arith.constant dense<0xFF800000> : vector<4x8xf32>
    %134 = vector.multi_reduction <maximumf>, %133, %cst_37 [2] : vector<4x8x8xf32> to vector<4x8xf32>
    %135 = vector.shape_cast %134 : vector<4x8xf32> to vector<4x8x1xf32>
    %136 = vector.broadcast %135 : vector<4x8x1xf32> to vector<4x8x8xf32>
    %137 = arith.subf %133, %136 : vector<4x8x8xf32>
    %138 = math.exp %137 : vector<4x8x8xf32>
    %cst_38 = arith.constant dense<0.000000e+00> : vector<4x8xf32>
    %139 = vector.multi_reduction <add>, %138, %cst_38 [2] : vector<4x8x8xf32> to vector<4x8xf32>
    %140 = vector.shape_cast %139 : vector<4x8xf32> to vector<4x8x1xf32>
    %141 = vector.broadcast %140 : vector<4x8x1xf32> to vector<4x8x8xf32>
    %142 = arith.divf %138, %141 : vector<4x8x8xf32>
    "tpu.trace_start"() <{level = 10 : i32, message = "tij,tjo->tio"}> : () -> ()
    %cst_39 = arith.constant dense<0.000000e+00> : vector<4x8x16xf32>
    %143 = tpu.matmul %142, %119, %cst_39 {dimension_numbers = #tpu.dot_dimension_numbers<[2], [1], [1], [2], [0, 0, 0, 1, 1, 2], [0], [0]>} : vector<4x8x8xf32>, vector<4x8x16xf32>, vector<4x8x16xf32> -> vector<4x8x16xf32>
    "tpu.trace_stop"() : () -> ()
    %144 = tpu.concatenate %68, %93, %118, %143 in 2 : vector<4x8x16xf32>, vector<4x8x16xf32>, vector<4x8x16xf32>, vector<4x8x16xf32> -> vector<4x8x64xf32>
    %145 = vector.shape_cast %16 : vector<1x64xf32> to vector<1x1x64xf32>
    %146 = vector.broadcast %145 : vector<1x1x64xf32> to vector<4x8x64xf32>
    %147 = arith.addf %144, %146 : vector<4x8x64xf32>
    %cst_40 = arith.constant 0.000000e+00 : f32
    %148 = vector.broadcast %cst_40 : f32 to vector<4x8x64xf32>
    %149 = arith.cmpf ogt, %147, %148 : vector<4x8x64xf32>
    %cst_41 = arith.constant 0.000000e+00 : f32
    %150 = vector.broadcast %cst_41 : f32 to vector<4x8x64xf32>
    %151 = arith.minimumf %147, %150 : vector<4x8x64xf32>
    %152 = math.exp %151 : vector<4x8x64xf32>
    %cst_42 = arith.constant 1.000000e+00 : f32
    %153 = vector.broadcast %cst_42 : f32 to vector<4x8x64xf32>
    %154 = arith.subf %152, %153 : vector<4x8x64xf32>
    %155 = arith.select %149, %147, %154 : vector<4x8x64xi1>, vector<4x8x64xf32>
    %c0_43 = arith.constant 0 : index
    %c0_44 = arith.constant 0 : index
    %156 = vector.load %arg5[%c0_43, %c0_44] : memref<64x18xf32, #tpu.memory_space<vmem>>, vector<64x18xf32>
    %c0_45 = arith.constant 0 : index
    %c0_46 = arith.constant 0 : index
    %157 = vector.load %arg6[%c0_45, %c0_46] : memref<1x16xf32, #tpu.memory_space<vmem>>, vector<1x16xf32>
    %158 = vector.shape_cast %9 : vector<8x1xf32> to vector<1x8x1xf32>
    %159 = vector.broadcast %158 : vector<1x8x1xf32> to vector<4x8x64xf32>
    %160 = arith.mulf %155, %159 : vector<4x8x64xf32>
    %cst_47 = arith.constant dense<0.000000e+00> : vector<4x64xf32>
    %161 = vector.multi_reduction <add>, %160, %cst_47 [1] : vector<4x8x64xf32> to vector<4x64xf32>
    %162 = vector.shape_cast %161 : vector<4x64xf32> to vector<4x1x64xf32>
    %163 = vector.broadcast %13 : f32 to vector<4x1x64xf32>
    %164 = arith.mulf %162, %163 : vector<4x1x64xf32>
    %165 = vector.broadcast %164 : vector<4x1x64xf32> to vector<4x8x64xf32>
    %166 = arith.subf %155, %165 : vector<4x8x64xf32>
    %167 = vector.shape_cast %9 : vector<8x1xf32> to vector<1x8x1xf32>
    %168 = vector.broadcast %167 : vector<1x8x1xf32> to vector<4x8x64xf32>
    %169 = arith.mulf %166, %168 : vector<4x8x64xf32>
    %170 = arith.mulf %169, %169 : vector<4x8x64xf32>
    %cst_48 = arith.constant dense<0.000000e+00> : vector<4x64xf32>
    %171 = vector.multi_reduction <add>, %170, %cst_48 [1] : vector<4x8x64xf32> to vector<4x64xf32>
    %172 = vector.shape_cast %171 : vector<4x64xf32> to vector<4x1x64xf32>
    %173 = vector.broadcast %13 : f32 to vector<4x1x64xf32>
    %174 = arith.mulf %172, %173 : vector<4x1x64xf32>
    %175 = vector.broadcast %164 : vector<4x1x64xf32> to vector<4x8x64xf32>
    %176 = arith.subf %155, %175 : vector<4x8x64xf32>
    %cst_49 = arith.constant 9.99999974E-6 : f32
    %177 = vector.broadcast %cst_49 : f32 to vector<4x1x64xf32>
    %178 = arith.addf %174, %177 : vector<4x1x64xf32>
    %179 = math.rsqrt %178 : vector<4x1x64xf32>
    %180 = vector.broadcast %179 : vector<4x1x64xf32> to vector<4x8x64xf32>
    %181 = arith.mulf %176, %180 : vector<4x8x64xf32>
    %182 = vector.shape_cast %181 : vector<4x8x64xf32> to vector<32x64xf32>
    %cst_50 = arith.constant dense<0.000000e+00> : vector<32x18xf32>
    %183 = tpu.matmul %182, %156, %cst_50 {dimension_numbers = #tpu.dot_dimension_numbers<[1], [0], [0], [1], [0, 0, 1, 1], [], []>} : vector<32x64xf32>, vector<64x18xf32>, vector<32x18xf32> -> vector<32x18xf32>
    %184 = vector.shape_cast %183 : vector<32x18xf32> to vector<4x8x18xf32>
    %185 = vector.extract_strided_slice %184 {offsets = [0, 0, 0], sizes = [4, 8, 16], strides = [1, 1, 1]} : vector<4x8x18xf32> to vector<4x8x16xf32>
    %186 = vector.extract_strided_slice %184 {offsets = [0, 0, 16], sizes = [4, 8, 1], strides = [1, 1, 1]} : vector<4x8x18xf32> to vector<4x8x1xf32>
    %187 = vector.extract_strided_slice %184 {offsets = [0, 0, 17], sizes = [4, 8, 1], strides = [1, 1, 1]} : vector<4x8x18xf32> to vector<4x8x1xf32>
    %188 = tpu.concatenate %186, %14 in 2 : vector<4x8x1xf32>, vector<4x8x1xf32> -> vector<4x8x2xf32>
    %189 = tpu.concatenate %14, %187 in 2 : vector<4x8x1xf32>, vector<4x8x1xf32> -> vector<4x8x2xf32>
    "tpu.trace_start"() <{level = 10 : i32, message = "tic,tjc->tij"}> : () -> ()
    %cst_51 = arith.constant dense<0.000000e+00> : vector<4x8x8xf32>
    %190 = tpu.matmul %188, %189, %cst_51 {dimension_numbers = #tpu.dot_dimension_numbers<[2], [2], [1], [1], [0, 0, 0, 1, 1, 1], [0], [0]>} : vector<4x8x2xf32>, vector<4x8x2xf32>, vector<4x8x8xf32> -> vector<4x8x8xf32>
    %cst_52 = arith.constant 0.000000e+00 : f32
    "tpu.trace_stop"() : () -> ()
    %191 = vector.broadcast %cst_52 : f32 to vector<4x8x8xf32>
    %192 = arith.cmpf oge, %190, %191 : vector<4x8x8xf32>
    %cst_53 = arith.constant 2.000000e-01 : f32
    %193 = vector.broadcast %cst_53 : f32 to vector<4x8x8xf32>
    %194 = arith.mulf %193, %190 : vector<4x8x8xf32>
    %195 = arith.select %192, %190, %194 : vector<4x8x8xi1>, vector<4x8x8xf32>
    %cst_54 = arith.constant -1.000000e+30 : f32
    %196 = vector.shape_cast %11 : vector<1x8xi1> to vector<1x1x8xi1>
    %197 = vector.broadcast %196 : vector<1x1x8xi1> to vector<4x8x8xi1>
    %198 = vector.broadcast %cst_54 : f32 to vector<4x8x8xf32>
    %199 = arith.select %197, %195, %198 : vector<4x8x8xi1>, vector<4x8x8xf32>
    %cst_55 = arith.constant dense<0xFF800000> : vector<4x8xf32>
    %200 = vector.multi_reduction <maximumf>, %199, %cst_55 [2] : vector<4x8x8xf32> to vector<4x8xf32>
    %201 = vector.shape_cast %200 : vector<4x8xf32> to vector<4x8x1xf32>
    %202 = vector.broadcast %201 : vector<4x8x1xf32> to vector<4x8x8xf32>
    %203 = arith.subf %199, %202 : vector<4x8x8xf32>
    %204 = math.exp %203 : vector<4x8x8xf32>
    %cst_56 = arith.constant dense<0.000000e+00> : vector<4x8xf32>
    %205 = vector.multi_reduction <add>, %204, %cst_56 [2] : vector<4x8x8xf32> to vector<4x8xf32>
    %206 = vector.shape_cast %205 : vector<4x8xf32> to vector<4x8x1xf32>
    %207 = vector.broadcast %206 : vector<4x8x1xf32> to vector<4x8x8xf32>
    %208 = arith.divf %204, %207 : vector<4x8x8xf32>
    "tpu.trace_start"() <{level = 10 : i32, message = "tij,tjo->tio"}> : () -> ()
    %cst_57 = arith.constant dense<0.000000e+00> : vector<4x8x16xf32>
    %209 = tpu.matmul %208, %185, %cst_57 {dimension_numbers = #tpu.dot_dimension_numbers<[2], [1], [1], [2], [0, 0, 0, 1, 1, 2], [0], [0]>} : vector<4x8x8xf32>, vector<4x8x16xf32>, vector<4x8x16xf32> -> vector<4x8x16xf32>
    "tpu.trace_stop"() : () -> ()
    %210 = vector.shape_cast %157 : vector<1x16xf32> to vector<1x1x16xf32>
    %211 = vector.broadcast %210 : vector<1x1x16xf32> to vector<4x8x16xf32>
    %212 = arith.addf %209, %211 : vector<4x8x16xf32>
    %c0_58 = arith.constant 0 : index
    %c0_59 = arith.constant 0 : index
    %c0_60 = arith.constant 0 : index
    %c0_61 = arith.constant 0 : index
    %213 = vector.load %arg7[%c0_58, %c0_59, %c0_60, %c0_61] : memref<1x4x8x16xf32, #tpu.memory_space<vmem>>, vector<1x4x8x16xf32>
    %214 = vector.shape_cast %213 : vector<1x4x8x16xf32> to vector<4x8x16xf32>
    %215 = vector.shape_cast %212 : vector<4x8x16xf32> to vector<1x4x8x16xf32>
    tpu.vector_store %arg7[%c0_58, %c0_59, %c0_60, %c0_61], %215 {strides = array<i32>} : memref<1x4x8x16xf32, #tpu.memory_space<vmem>>, vector<1x4x8x16xf32>,
    return
  }
  func.func @transform_0(%arg0: i32, %arg1: memref<2xi32, #tpu.memory_space<smem>>) -> (i32, i32, i32, i32) {
    %c0_i32 = arith.constant 0 : i32
    %c0_i32_0 = arith.constant 0 : i32
    %c0_i32_1 = arith.constant 0 : i32
    %c0_i32_2 = arith.constant 0 : i32
    return %arg0, %c0_i32, %c0_i32_0, %c0_i32_1 : i32, i32, i32, i32
  }
  func.func @transform_1(%arg0: i32, %arg1: memref<2xi32, #tpu.memory_space<smem>>) -> (i32, i32) {
    %c0_i32 = arith.constant 0 : i32
    %c0_i32_0 = arith.constant 0 : i32
    %c0_i32_1 = arith.constant 0 : i32
    return %c0_i32, %c0_i32_0 : i32, i32
  }
  func.func @transform_2(%arg0: i32, %arg1: memref<2xi32, #tpu.memory_space<smem>>) -> (i32, i32) {
    %c0_i32 = arith.constant 0 : i32
    %c0_i32_0 = arith.constant 0 : i32
    %c0_i32_1 = arith.constant 0 : i32
    return %c0_i32, %c0_i32_0 : i32, i32
  }
  func.func @transform_3(%arg0: i32, %arg1: memref<2xi32, #tpu.memory_space<smem>>) -> (i32, i32) {
    %c0_i32 = arith.constant 0 : i32
    %c0_i32_0 = arith.constant 0 : i32
    %c0_i32_1 = arith.constant 0 : i32
    return %c0_i32, %c0_i32_0 : i32, i32
  }
  func.func @transform_4(%arg0: i32, %arg1: memref<2xi32, #tpu.memory_space<smem>>) -> (i32, i32) {
    %c0_i32 = arith.constant 0 : i32
    %c0_i32_0 = arith.constant 0 : i32
    %c0_i32_1 = arith.constant 0 : i32
    return %c0_i32, %c0_i32_0 : i32, i32
  }
  func.func @transform_5(%arg0: i32, %arg1: memref<2xi32, #tpu.memory_space<smem>>) -> (i32, i32, i32, i32) {
    %c0_i32 = arith.constant 0 : i32
    %c0_i32_0 = arith.constant 0 : i32
    %c0_i32_1 = arith.constant 0 : i32
    %c0_i32_2 = arith.constant 0 : i32
    return %arg0, %c0_i32, %c0_i32_0, %c0_i32_1 : i32, i32, i32, i32
  }
}

</mosaic_0001>

<llo_original>
// kernel: tpu_custom_call.1
$region0: #{tpu_custom_call.1}
  #allocation0 [shape = 'u32[]', space=smem, size = 0x4, offset = 0x4, fixed_abs, tag = 'smem constant byte address 0x4 - core index']
  #allocation1 [shape = 'u32[72,128]{1,0:T(1,128)}', space=vmem, size = 0x9000, scoped, tag = 'internal scratch']
  #allocation2 [shape = 's32[1]{0}', space=sflag, size = 0x4, scoped, tag = 'scoped memory for tpu_custom_call.1']
  #allocation3 [shape = 'u8[512]{0}', space=smem, size = 0x200, scoped, tag = 'prefetched SMEM operand 0']
  %s0 = inlined_call_operand.vmem [shape: s32[2], index: 0, kind: input, shape index: {}]
  %s1 = inlined_call_operand.vmem [shape: f32[2,4,8,16], index: 1, kind: input, shape index: {}]
  %s2 = inlined_call_operand.vmem [shape: f32[16,72], index: 2, kind: input, shape index: {}]
  %s3 = inlined_call_operand.vmem [shape: f32[1,64], index: 3, kind: input, shape index: {}]
  %s4 = inlined_call_operand.vmem [shape: f32[64,18], index: 4, kind: input, shape index: {}]
  %s5 = inlined_call_operand.vmem [shape: f32[1,16], index: 5, kind: input, shape index: {}]
  %s6 = inlined_call_operand.hbm [shape: f32[2,4,8,16], index: 6, kind: output, shape index: {}]
  %s7 = sld [smem:[#allocation0]]
  $region53: #{tpu_custom_call.1} parent=0
    _
  %s9 = ssub.s32 1, %s7
  %s10 = scalar_select 0, %s9, %s7
  %s12 = sshll.u32 %s0, 4
  %s13 = int_to_ptr.vmem [resolvable:$true] %s12
  %15 = dma.vmem_to_smem %s13, 16, [#allocation3], [#allocation2]
  %17 = dma.done [#allocation2], 16
  %18 = sfence
  $region1: #{tpu_custom_call.1} parent=0
    #allocation4 [shape = 'u8[32768]{0}', space=vmem, size = 0x8000, scoped, tag = 'output window, operand 0']
    #allocation5 [shape = 's32[2]{0}', space=sflag, size = 0x8, scoped, tag = 'scoped memory for tpu_custom_call.1']
    %19 = vsyncpa [#allocation5], 0
    %s20 = scalar_lea.sflag [#allocation5], 1
    %21 = vsyncpa %s20, 0
    loop: start=0, step=1, limit=4
    $region2: #{tpu_custom_call.1} parent=1 // loop_pre_header
      _
    $region3: #{tpu_custom_call.1} parent=1 // loop_header
      %s23 = sphi 0, %s27
      %p24 = scmp.ge.s32.totalorder %s23, 4
      %s33 = sphi 0, %s35
      %s36 = sphi 0, %s33
      %s37 = sphi 0, %s36
      %s53 = sphi 0, %s37
      %s57 = sphi 0, %s57
      %s59 = sphi 0, %s57
      %s60 = sphi 0, %s59
      %s74 = sphi 0, %s60
      %s78 = sphi 0, %s78
      %s80 = sphi 0, %s78
      %s81 = sphi 0, %s80
      %s95 = sphi 0, %s81
      %s99 = sphi 0, %s99
      %s101 = sphi 0, %s99
      %s102 = sphi 0, %s101
      %s116 = sphi 0, %s102
      %s120 = sphi 0, %s120
      %s122 = sphi 0, %s120
      %s123 = sphi 0, %s122
      %s137 = sphi 0, %s123
      %s143 = sphi 0, %s145
      %s146 = sphi 0, %s143
      %s147 = sphi 0, %s146
      %s163 = sphi 0, %s147
    $region4: #{tpu_custom_call.1} parent=1 // loop_header_branch
      %26 = sbr.rel (%p24) target = $region8
    $region5: #{tpu_custom_call.1} parent=1 // loop_body
      %s28 = ssub.s32 %s23, 1
      %s29 = ssub.s32 %s23, 2
      %s30 = sadd.s32 %s23, 1
      %s31 = ssub.s32 %s23, %s30
      %p32 = scmp.eq.s32.totalorder %s31, 0
      %s34 = sadd.s32 %s33, 1
      %s35 = scalar_select %p32, %s33, %s34
      %p38 = pneg %p32
      %p39 = scmp.eq.s32.totalorder %s23, 1
      %p40 = por %p38, %p39
      %p41 = scmp.ne.s32.totalorder %s33, %s36
      %p42 = scmp.eq.s32.totalorder %s23, 0
      %p43 = por %p41, %p42
      %p44 = scmp.ne.s32.totalorder %s33, %s36
      %p45 = scmp.eq.s32.totalorder %s28, 1
      %p46 = por %p44, %p45
      %p47 = scmp.ne.s32.totalorder %s36, %s37
      %p48 = scmp.eq.s32.totalorder %s28, 0
      %p49 = por %p47, %p48
      %p50 = scmp.ne.s32.totalorder %s36, %s37
      %p51 = scmp.eq.s32.totalorder %s29, 1
      %p52 = por %p50, %p51
      %p54 = scmp.ne.s32.totalorder %s37, %s53
      %p55 = scmp.eq.s32.totalorder %s29, 0
      %p56 = por %p54, %p55
      %s58 = sadd.s32 %s57, 1
      %p61 = scmp.eq.s32.totalorder %s23, 1
      %p62 = scmp.ne.s32.totalorder %s57, %s59
      %p63 = scmp.eq.s32.totalorder %s23, 0
      %p64 = por %p62, %p63
      %p65 = scmp.ne.s32.totalorder %s57, %s59
      %p66 = scmp.eq.s32.totalorder %s28, 1
      %p67 = por %p65, %p66
      %p68 = scmp.ne.s32.totalorder %s59, %s60
      %p69 = scmp.eq.s32.totalorder %s28, 0
      %p70 = por %p68, %p69
      %p71 = scmp.ne.s32.totalorder %s59, %s60
      %p72 = scmp.eq.s32.totalorder %s29, 1
      %p73 = por %p71, %p72
      %p75 = scmp.ne.s32.totalorder %s60, %s74
      %p76 = scmp.eq.s32.totalorder %s29, 0
      %p77 = por %p75, %p76
      %s79 = sadd.s32 %s78, 1
      %p82 = scmp.eq.s32.totalorder %s23, 1
      %p83 = scmp.ne.s32.totalorder %s78, %s80
      %p84 = scmp.eq.s32.totalorder %s23, 0
      %p85 = por %p83, %p84
      %p86 = scmp.ne.s32.totalorder %s78, %s80
      %p87 = scmp.eq.s32.totalorder %s28, 1
      %p88 = por %p86, %p87
      %p89 = scmp.ne.s32.totalorder %s80, %s81
      %p90 = scmp.eq.s32.totalorder %s28, 0
      %p91 = por %p89, %p90
      %p92 = scmp.ne.s32.totalorder %s80, %s81
      %p93 = scmp.eq.s32.totalorder %s29, 1
      %p94 = por %p92, %p93
      %p96 = scmp.ne.s32.totalorder %s81, %s95
      %p97 = scmp.eq.s32.totalorder %s29, 0
      %p98 = por %p96, %p97
      %s100 = sadd.s32 %s99, 1
      %p103 = scmp.eq.s32.totalorder %s23, 1
      %p104 = scmp.ne.s32.totalorder %s99, %s101
      %p105 = scmp.eq.s32.totalorder %s23, 0
      %p106 = por %p104, %p105
      %p107 = scmp.ne.s32.totalorder %s99, %s101
      %p108 = scmp.eq.s32.totalorder %s28, 1
      %p109 = por %p107, %p108
      %p110 = scmp.ne.s32.totalorder %s101, %s102
      %p111 = scmp.eq.s32.totalorder %s28, 0
      %p112 = por %p110, %p111
      %p113 = scmp.ne.s32.totalorder %s101, %s102
      %p114 = scmp.eq.s32.totalorder %s29, 1
      %p115 = por %p113, %p114
      %p117 = scmp.ne.s32.totalorder %s102, %s116
      %p118 = scmp.eq.s32.totalorder %s29, 0
      %p119 = por %p117, %p118
      %s121 = sadd.s32 %s120, 1
      %p124 = scmp.eq.s32.totalorder %s23, 1
      %p125 = scmp.ne.s32.totalorder %s120, %s122
      %p126 = scmp.eq.s32.totalorder %s23, 0
      %p127 = por %p125, %p126
      %p128 = scmp.ne.s32.totalorder %s120, %s122
      %p129 = scmp.eq.s32.totalorder %s28, 1
      %p130 = por %p128, %p129
      %p131 = scmp.ne.s32.totalorder %s122, %s123
      %p132 = scmp.eq.s32.totalorder %s28, 0
      %p133 = por %p131, %p132
      %p134 = scmp.ne.s32.totalorder %s122, %s123
      %p135 = scmp.eq.s32.totalorder %s29, 1
      %p136 = por %p134, %p135
      %p138 = scmp.ne.s32.totalorder %s123, %s137
      %p139 = scmp.eq.s32.totalorder %s29, 0
      %p140 = por %p138, %p139
      %s141 = ssub.s32 %s23, %s30
      %p142 = scmp.eq.s32.totalorder %s141, 0
      %s144 = sadd.s32 %s143, 1
      %s145 = scalar_select %p142, %s143, %s144
      %p148 = pneg %p142
      %p149 = scmp.eq.s32.totalorder %s23, 1
      %p150 = por %p148, %p149
      %p151 = scmp.ne.s32.totalorder %s143, %s146
      %p152 = scmp.eq.s32.totalorder %s23, 0
      %p153 = por %p151, %p152
      %p154 = scmp.ne.s32.totalorder %s143, %s146
      %p155 = scmp.eq.s32.totalorder %s28, 1
      %p156 = por %p154, %p155
      %p157 = scmp.ne.s32.totalorder %s146, %s147
      %p158 = scmp.eq.s32.totalorder %s28, 0
      %p159 = por %p157, %p158
      %p160 = scmp.ne.s32.totalorder %s146, %s147
      %p161 = scmp.eq.s32.totalorder %s29, 1
      %p162 = por %p160, %p161
      %p164 = scmp.ne.s32.totalorder %s147, %s163
      %p165 = scmp.eq.s32.totalorder %s29, 0
      %p166 = por %p164, %p165
      %p167 = scmp.le.s32.totalorder 1, %s23
      %p168 = scmp.lt.s32.totalorder %s23, 3
      %p169 = pnand %p167, %p168
      %p170 = pneg %p169
      // Predicated region
      $region9: #{tpu_custom_call.1} parent=5 // pred_check
        _
      $region10: #{tpu_custom_call.1} parent=5 // pred_check_branch
        %172 = sbr.rel (%p169) target = $region12
      $region11: #{tpu_custom_call.1} parent=5 // pred_region
        %s173 = ssub.s32 %s23, 1
        // Predicated region
        $region13: #{tpu_custom_call.1} parent=11 // pred_check
          %p174 = pneg %p70
        $region14: #{tpu_custom_call.1} parent=11 // pred_check_branch
          %176 = sbr.rel (%p174) target = $region16
        $region15: #{tpu_custom_call.1} parent=11 // pred_region
          _
        $region16: #{tpu_custom_call.1} parent=11 // pred_fallthru
          _
        // Predicated region
        $region17: #{tpu_custom_call.1} parent=11 // pred_check
          %p177 = pneg %p91
        $region18: #{tpu_custom_call.1} parent=11 // pred_check_branch
          %179 = sbr.rel (%p177) target = $region20
        $region19: #{tpu_custom_call.1} parent=11 // pred_region
          _
        $region20: #{tpu_custom_call.1} parent=11 // pred_fallthru
          _
        // Predicated region
        $region21: #{tpu_custom_call.1} parent=11 // pred_check
          %p180 = pneg %p112
        $region22: #{tpu_custom_call.1} parent=11 // pred_check_branch
          %182 = sbr.rel (%p180) target = $region24
        $region23: #{tpu_custom_call.1} parent=11 // pred_region
          _
        $region24: #{tpu_custom_call.1} parent=11 // pred_fallthru
          _
        // Predicated region
        $region25: #{tpu_custom_call.1} parent=11 // pred_check
          %p183 = pneg %p133
        $region26: #{tpu_custom_call.1} parent=11 // pred_check_branch
          %185 = sbr.rel (%p183) target = $region28
        $region27: #{tpu_custom_call.1} parent=11 // pred_region
          _
        $region28: #{tpu_custom_call.1} parent=11 // pred_fallthru
          _
      $region12: #{tpu_custom_call.1} parent=5 // pred_fallthru
        _
      %p186 = scmp.lt.s32.totalorder %s23, 2
      // Predicated region
      $region29: #{tpu_custom_call.1} parent=5 // pred_check
        %p187 = pneg %p186
      $region30: #{tpu_custom_call.1} parent=5 // pred_check_branch
        %189 = sbr.rel (%p187) target = $region32
      $region31: #{tpu_custom_call.1} parent=5 // pred_region
        // Predicated region
        $region33: #{tpu_custom_call.1} parent=31 // pred_check
          %p190 = pneg %p43
        $region34: #{tpu_custom_call.1} parent=31 // pred_check_branch
          %192 = sbr.rel (%p190) target = $region36
        $region35: #{tpu_custom_call.1} parent=31 // pred_region
          %p193 = scmp.lt.s32.totalorder %s23, 1
          %s194 = scalar_select %p193, %s23, 1
          %s195 = smul.addr %s194, 4
          %s196 = smul.addr %s195, 8
          %s197 = scalar_lea.vmem %s1, %s196
        $region36: #{tpu_custom_call.1} parent=31 // pred_fallthru
          _
      $region32: #{tpu_custom_call.1} parent=5 // pred_fallthru
        _
      %p198 = scmp.le.s32.totalorder 1, %s23
      %p199 = scmp.lt.s32.totalorder %s23, 3
      %p200 = pnand %p198, %p199
      %p201 = pneg %p200
      // Predicated region
      $region37: #{tpu_custom_call.1} parent=5 // pred_check
        _
      $region38: #{tpu_custom_call.1} parent=5 // pred_check_branch
        %203 = sbr.rel (%p200) target = $region40
      $region39: #{tpu_custom_call.1} parent=5 // pred_region
        %s204 = ssub.s32 %s23, 1
        %p205 = scmp.lt.s32.totalorder %s28, 1
        %s206 = scalar_select %p205, %s28, 1
        %s207 = smul.addr %s206, 4
        %s208 = smul.addr %s207, 8
        %s209 = scalar_lea.vmem %s1, %s208
        %p210 = pneg %p49
        %p211 = pneg %p46
        %p212 = pneg %p70
        %p213 = pneg %p67
        %p214 = pneg %p91
        %p215 = pneg %p88
        %p216 = pneg %p112
        %p217 = pneg %p109
        %p218 = pneg %p133
        %p219 = pneg %p130
        %p220 = pneg %p159
        %p221 = pneg %p156
        %s222 = sand.u32 %s146, 1
        %s223 = scalar_lea.sflag [#allocation5], %s222
        %s224 = sand.u32 %s146, 1
        %s225 = smul.addr %s224, 32
        %s226 = scalar_lea.vmem [#allocation4], %s225
        %p227 = scmp.lt.s32.totalorder %s28, 1
        %s228 = scalar_select %p227, %s28, 1
        %s229 = smul.addr %s228, 4
        %s230 = smul.addr %s229, 8
        %s231 = scalar_lea.vmem %s1, %s230
        %s232 = sld [smem:[#allocation3 + %s28]]
        %v233 = vld [vmem:[%s231] sm:$0xff]
        %v234 = vld [vmem:[%s231 + $0x8] sm:$0xff]
        %v235 = vld [vmem:[%s231 + $0x10] sm:$0xff]
        %v236 = vld [vmem:[%s231 + $0x18] sm:$0xff]
        %v237 = vlaneseq
        %v238 = vshrl.u32 %v237, 7
        %v239 = vlaneseq
        %v240 = vand.u32 %v239, 127
        %v241 = vstv %s232
        %vm242 = vcmp.lt.s32.totalorder %v238, %v241
        %v243 = vsel %vm242, 1, 0
        %v244 = vcvt.s32.f32 %v243
        %vm245 = vcmp.lt.s32.totalorder %v240, %v241
        %s246 = scvt.s32.f32 %s232
        %v247 = vstv %s246
        %v248 = vrcp.pop %v247
        %v249 = vmul.f32 %v247, %v248
        %v250 = vsub.f32 1.0, %v249
        %v251 = vmul.f32 %v248, %v250
        %v252 = vadd.f32 %v248, %v251
        %vm253 = vweird.f32 %v247
        %vm254 = vweird.f32 %v248
        %vm255 = vmor %vm253, %vm254
        %v256 = vsel %vm255, %v248, %v252
        %v257 = vand.u32 2147483647, %v247
        %vm258 = vcmp.eq.f32.partialorder %v257, 8.507059e+37
        %v259 = vand.u32 %v247, 2147483648
        %v260 = vor.u32 1.1754944e-38, %v259
        %v261 = vsel %vm258, %v260, %v256
        %s262 = vtos %v261
        %v263 = vld [vmem:[%s2] sm:$0xff]
        %v264 = vld [vmem:[%s2 + $0x8] sm:$0xff]
        %v265 = vld [vmem:[%s3] sm:$0x1]
        %v266 = vmul.f32 %v233, %v244
        %v267 = vmul.f32 %v234, %v244
        %v268 = vmul.f32 %v235, %v244
        %v269 = vmul.f32 %v236, %v244
        %vm270 = vcmask 130048
        %v271 = vsel %vm270, %v266, 0.0
        %v272 = vrot.slane %v271, 4
        %v273 = vadd.f32 %v271, %v272
        %v274 = vrot.slane %v273, 2
        %v275 = vadd.f32 %v273, %v274
        %v276 = vrot.slane %v275, 1
        %v277 = vadd.f32 %v275, %v276
        %v278 = vsel %vm270, %v267, 0.0
        %v279 = vrot.slane %v278, 4
        %v280 = vadd.f32 %v278, %v279
        %v281 = vrot.slane %v280, 2
        %v282 = vadd.f32 %v280, %v281
        %v283 = vrot.slane %v282, 1
        %v284 = vadd.f32 %v282, %v283
        %v285 = vsel %vm270, %v268, 0.0
        %v286 = vrot.slane %v285, 4
        %v287 = vadd.f32 %v285, %v286
        %v288 = vrot.slane %v287, 2
        %v289 = vadd.f32 %v287, %v288
        %v290 = vrot.slane %v289, 1
        %v291 = vadd.f32 %v289, %v290
        %v292 = vsel %vm270, %v269, 0.0
        %v293 = vrot.slane %v292, 4
        %v294 = vadd.f32 %v292, %v293
        %v295 = vrot.slane %v294, 2
        %v296 = vadd.f32 %v294, %v295
        %v297 = vrot.slane %v296, 1
        %v298 = vadd.f32 %v296, %v297
        %v299 = vstv %s262
        %v300 = vmul.f32 %v277, %v299
        %v301 = vmul.f32 %v284, %v299
        %v302 = vmul.f32 %v291, %v299
        %v303 = vmul.f32 %v298, %v299
        %v304 = vsub.f32 %v233, %v300
        %v305 = vsub.f32 %v234, %v301
        %v306 = vsub.f32 %v235, %v302
        %v307 = vsub.f32 %v236, %v303
        %v308 = vmul.f32 %v304, %v244
        %v309 = vmul.f32 %v305, %v244
        %v310 = vmul.f32 %v306, %v244
        %v311 = vmul.f32 %v307, %v244
        %v312 = vmul.f32 %v308, %v308
        %v313 = vmul.f32 %v309, %v309
        %v314 = vmul.f32 %v310, %v310
        %v315 = vmul.f32 %v311, %v311
        %v316 = vsel %vm270, %v312, 0.0
        %v317 = vrot.slane %v316, 4
        %v318 = vadd.f32 %v316, %v317
        %v319 = vrot.slane %v318, 2
        %v320 = vadd.f32 %v318, %v319
        %v321 = vrot.slane %v320, 1
        %v322 = vadd.f32 %v320, %v321
        %v323 = vsel %vm270, %v313, 0.0
        %v324 = vrot.slane %v323, 4
        %v325 = vadd.f32 %v323, %v324
        %v326 = vrot.slane %v325, 2
        %v327 = vadd.f32 %v325, %v326
        %v328 = vrot.slane %v327, 1
        %v329 = vadd.f32 %v327, %v328
        %v330 = vsel %vm270, %v314, 0.0
        %v331 = vrot.slane %v330, 4
        %v332 = vadd.f32 %v330, %v331
        %v333 = vrot.slane %v332, 2
        %v334 = vadd.f32 %v332, %v333
        %v335 = vrot.slane %v334, 1
        %v336 = vadd.f32 %v334, %v335
        %v337 = vsel %vm270, %v315, 0.0
        %v338 = vrot.slane %v337, 4
        %v339 = vadd.f32 %v337, %v338
        %v340 = vrot.slane %v339, 2
        %v341 = vadd.f32 %v339, %v340
        %v342 = vrot.slane %v341, 1
        %v343 = vadd.f32 %v341, %v342
        %v344 = vmul.f32 %v322, %v299
        %v345 = vmul.f32 %v329, %v299
        %v346 = vmul.f32 %v336, %v299
        %v347 = vmul.f32 %v343, %v299
        %v348 = vadd.f32 %v344, 1e-05
        %v349 = vadd.f32 %v345, 1e-05
        %v350 = vadd.f32 %v346, 1e-05
        %v351 = vadd.f32 %v347, 1e-05
        %v352 = vrsqrt.pop %v348
        %v353 = vmul.f32 %v352, %v348
        %v354 = vmul.f32 %v353, %v352
        %v355 = vmul.f32 0.5, %v354
        %v356 = vsub.f32 1.5, %v355
        %v357 = vmul.f32 %v352, %v356
        %vm358 = vweird.f32 %v348
        %vm359 = vweird.f32 %v352
        %vm360 = vmor %vm358, %vm359
        %v361 = vsel %vm360, %v352, %v357
        %v362 = vrsqrt.pop %v349
        %v363 = vmul.f32 %v362, %v349
        %v364 = vmul.f32 %v363, %v362
        %v365 = vmul.f32 0.5, %v364
        %v366 = vsub.f32 1.5, %v365
        %v367 = vmul.f32 %v362, %v366
        %vm368 = vweird.f32 %v349
        %vm369 = vweird.f32 %v362
        %vm370 = vmor %vm368, %vm369
        %v371 = vsel %vm370, %v362, %v367
        %v372 = vrsqrt.pop %v350
        %v373 = vmul.f32 %v372, %v350
        %v374 = vmul.f32 %v373, %v372
        %v375 = vmul.f32 0.5, %v374
        %v376 = vsub.f32 1.5, %v375
        %v377 = vmul.f32 %v372, %v376
        %vm378 = vweird.f32 %v350
        %vm379 = vweird.f32 %v372
        %vm380 = vmor %vm378, %vm379
        %v381 = vsel %vm380, %v372, %v377
        %v382 = vrsqrt.pop %v351
        %v383 = vmul.f32 %v382, %v351
        %v384 = vmul.f32 %v383, %v382
        %v385 = vmul.f32 0.5, %v384
        %v386 = vsub.f32 1.5, %v385
        %v387 = vmul.f32 %v382, %v386
        %vm388 = vweird.f32 %v351
        %vm389 = vweird.f32 %v382
        %vm390 = vmor %vm388, %vm389
        %v391 = vsel %vm390, %v382, %v387
        %v392 = vmul.f32 %v304, %v361
        %v393 = vmul.f32 %v305, %v371
        %v394 = vmul.f32 %v306, %v381
        %v395 = vmul.f32 %v307, %v391
        %v397 = vsel %vm270, %v392, 0
        %v400 = vsel %vm270, %v393, 0
        %v403 = vsel %vm270, %v394, 0
        %v406 = vsel %vm270, %v395, 0
        %408 = vmatpush.msra.mxu0 0.0
        %409 = vmatpush.msra.mxu0 0.0
        %410 = vmatpush.msra.mxu0 0.0
        %411 = vmatpush.msra.mxu0 0.0
        %412 = vmatpush.msra.mxu0 0.0
        %413 = vmatpush.msra.mxu0 0.0
        %414 = vmatpush.msra.mxu0 0.0
        %415 = vmatpush.msra.mxu0 0.0
        %416 = vmatpush.msra.mxu0 0.0
        %417 = vmatpush.msra.mxu0 0.0
        %418 = vmatpush.msra.mxu0 0.0
        %419 = vmatpush.msra.mxu0 0.0
        %420 = vmatpush.msra.mxu0 0.0
        %421 = vmatpush.msra.mxu0 0.0
        %422 = vmatpush.msra.mxu0 %v264
        %423 = vmatpush.msra.mxu0 %v263
        %424 = vmatmul.f32.gmra.mxu0 %v397
        %v425 = vpop.f32.mrf.mxu0
        %v426 = vadd.f32 0.0, %v425
        %427 = vmatmul.f32.gmra.mxu0 %v400
        %v428 = vpop.f32.mrf.mxu0
        %v429 = vadd.f32 0.0, %v428
        %430 = vmatmul.f32.gmra.mxu0 %v403
        %v431 = vpop.f32.mrf.mxu0
        %v432 = vadd.f32 0.0, %v431
        %433 = vmatmul.f32.gmra.mxu0 %v406
        %v434 = vpop.f32.mrf.mxu0
        %v435 = vadd.f32 0.0, %v434
        %436 = vdwg.mxu0
        %441 = vrot.lane.b32.xlu0 %v426, 64
        %v442 = vpop.permute.xlu0 %441
        %443 = vrot.lane.b32.xlu0 %v429, 64
        %v444 = vpop.permute.xlu0 %443
        %445 = vrot.lane.b32.xlu0 %v432, 64
        %v446 = vpop.permute.xlu0 %445
        %447 = vrot.lane.b32.xlu0 %v435, 64
        %v448 = vpop.permute.xlu0 %447
        %vm453 = vcmask 7168
        %v454 = vsel %vm453, %v442, 1.0
        %v455 = vsel %vm453, %v444, 1.0
        %v456 = vsel %vm453, %v446, 1.0
        %v457 = vsel %vm453, %v448, 1.0
        %458 = vrot.lane.b32.xlu0 %v426, 61
        %v459 = vpop.permute.xlu0 %458
        %460 = vrot.lane.b32.xlu0 %v429, 61
        %v461 = vpop.permute.xlu0 %460
        %462 = vrot.lane.b32.xlu0 %v432, 61
        %v463 = vpop.permute.xlu0 %462
        %464 = vrot.lane.b32.xlu0 %v435, 61
        %v465 = vpop.permute.xlu0 %464
        %v470 = vsel %vm453, 1.0, %v459
        %v471 = vsel %vm453, 1.0, %v461
        %v472 = vsel %vm453, 1.0, %v463
        %v473 = vsel %vm453, 1.0, %v465
        %vm474 = vcmask 15360
        %v476 = vsel %vm474, %v454, 0
        %v479 = vsel %vm474, %v470, 0
        %481 = vmatpush.xpose.msra.mxu0 0.0
        %482 = vmatpush.xpose.msra.mxu0 0.0
        %483 = vmatpush.xpose.msra.mxu0 0.0
        %484 = vmatpush.xpose.msra.mxu0 0.0
        %485 = vmatpush.xpose.msra.mxu0 0.0
        %486 = vmatpush.xpose.msra.mxu0 0.0
        %487 = vmatpush.xpose.msra.mxu0 0.0
        %488 = vmatpush.xpose.msra.mxu0 0.0
        %489 = vmatpush.xpose.msra.mxu0 0.0
        %490 = vmatpush.xpose.msra.mxu0 0.0
        %491 = vmatpush.xpose.msra.mxu0 0.0
        %492 = vmatpush.xpose.msra.mxu0 0.0
        %493 = vmatpush.xpose.msra.mxu0 0.0
        %494 = vmatpush.xpose.msra.mxu0 0.0
        %495 = vmatpush.xpose.msra.mxu0 0.0
        %496 = vmatpush.xpose.msra.mxu0 %v479
        %497 = vmatmul.f32.gmra.mxu0 %v476
        %v498 = vpop.f32.mrf.mxu0
        %v499 = vadd.f32 0.0, %v498
        %500 = vdwg.mxu0
        %v502 = vsel %vm474, %v455, 0
        %v505 = vsel %vm474, %v471, 0
        %507 = vmatpush.xpose.msra.mxu0 0.0
        %508 = vmatpush.xpose.msra.mxu0 0.0
        %509 = vmatpush.xpose.msra.mxu0 0.0
        %510 = vmatpush.xpose.msra.mxu0 0.0
        %511 = vmatpush.xpose.msra.mxu0 0.0
        %512 = vmatpush.xpose.msra.mxu0 0.0
        %513 = vmatpush.xpose.msra.mxu0 0.0
        %514 = vmatpush.xpose.msra.mxu0 0.0
        %515 = vmatpush.xpose.msra.mxu0 0.0
        %516 = vmatpush.xpose.msra.mxu0 0.0
        %517 = vmatpush.xpose.msra.mxu0 0.0
        %518 = vmatpush.xpose.msra.mxu0 0.0
        %519 = vmatpush.xpose.msra.mxu0 0.0
        %520 = vmatpush.xpose.msra.mxu0 0.0
        %521 = vmatpush.xpose.msra.mxu0 0.0
        %522 = vmatpush.xpose.msra.mxu0 %v505
        %523 = vmatmul.f32.gmra.mxu0 %v502
        %v524 = vpop.f32.mrf.mxu0
        %v525 = vadd.f32 0.0, %v524
        %526 = vdwg.mxu0
        %v528 = vsel %vm474, %v456, 0
        %v531 = vsel %vm474, %v472, 0
        %533 = vmatpush.xpose.msra.mxu0 0.0
        %534 = vmatpush.xpose.msra.mxu0 0.0
        %535 = vmatpush.xpose.msra.mxu0 0.0
        %536 = vmatpush.xpose.msra.mxu0 0.0
        %537 = vmatpush.xpose.msra.mxu0 0.0
        %538 = vmatpush.xpose.msra.mxu0 0.0
        %539 = vmatpush.xpose.msra.mxu0 0.0
        %540 = vmatpush.xpose.msra.mxu0 0.0
        %541 = vmatpush.xpose.msra.mxu0 0.0
        %542 = vmatpush.xpose.msra.mxu0 0.0
        %543 = vmatpush.xpose.msra.mxu0 0.0
        %544 = vmatpush.xpose.msra.mxu0 0.0
        %545 = vmatpush.xpose.msra.mxu0 0.0
        %546 = vmatpush.xpose.msra.mxu0 0.0
        %547 = vmatpush.xpose.msra.mxu0 0.0
        %548 = vmatpush.xpose.msra.mxu0 %v531
        %549 = vmatmul.f32.gmra.mxu0 %v528
        %v550 = vpop.f32.mrf.mxu0
        %v551 = vadd.f32 0.0, %v550
        %552 = vdwg.mxu0
        %v554 = vsel %vm474, %v457, 0
        %v557 = vsel %vm474, %v473, 0
        %559 = vmatpush.xpose.msra.mxu0 0.0
        %560 = vmatpush.xpose.msra.mxu0 0.0
        %561 = vmatpush.xpose.msra.mxu0 0.0
        %562 = vmatpush.xpose.msra.mxu0 0.0
        %563 = vmatpush.xpose.msra.mxu0 0.0
        %564 = vmatpush.xpose.msra.mxu0 0.0
        %565 = vmatpush.xpose.msra.mxu0 0.0
        %566 = vmatpush.xpose.msra.mxu0 0.0
        %567 = vmatpush.xpose.msra.mxu0 0.0
        %568 = vmatpush.xpose.msra.mxu0 0.0
        %569 = vmatpush.xpose.msra.mxu0 0.0
        %570 = vmatpush.xpose.msra.mxu0 0.0
        %571 = vmatpush.xpose.msra.mxu0 0.0
        %572 = vmatpush.xpose.msra.mxu0 0.0
        %573 = vmatpush.xpose.msra.mxu0 0.0
        %574 = vmatpush.xpose.msra.mxu0 %v557
        %575 = vmatmul.f32.gmra.mxu0 %v554
        %v576 = vpop.f32.mrf.mxu0
        %v577 = vadd.f32 0.0, %v576
        %578 = vdwg.mxu0
        %vm579 = vcmp.ge.f32.partialorder %v499, 0.0
        %vm580 = vcmp.ge.f32.partialorder %v525, 0.0
        %vm581 = vcmp.ge.f32.partialorder %v551, 0.0
        %vm582 = vcmp.ge.f32.partialorder %v577, 0.0
        %v583 = vmul.f32 %v499, 0.2
        %v584 = vmul.f32 %v525, 0.2
        %v585 = vmul.f32 %v551, 0.2
        %v586 = vmul.f32 %v577, 0.2
        %v587 = vsel %vm579, %v499, %v583
        %v588 = vsel %vm580, %v525, %v584
        %v589 = vsel %vm581, %v551, %v585
        %v590 = vsel %vm582, %v577, %v586
        %v591 = vsel %vm245, 1, 0
        %vm592 = vcmp.eq.s32.totalorder %v591, 1
        %v593 = vsel %vm592, %v587, -1e+30
        %v594 = vsel %vm592, %v588, -1e+30
        %v595 = vsel %vm592, %v589, -1e+30
        %v596 = vsel %vm592, %v590, -1e+30
        %vm597 = vcmask 64512
        %v598 = vsel %vm597, %v593, -inf
        %599 = vmax.xlane.f32.xlu0 %v598
        %v600 = vpop.xlane.xlu0 %599
        %v601 = vsel %vm597, %v594, -inf
        %602 = vmax.xlane.f32.xlu0 %v601
        %v603 = vpop.xlane.xlu0 %602
        %v604 = vsel %vm597, %v595, -inf
        %605 = vmax.xlane.f32.xlu0 %v604
        %v606 = vpop.xlane.xlu0 %605
        %v607 = vsel %vm597, %v596, -inf
        %608 = vmax.xlane.f32.xlu0 %v607
        %v609 = vpop.xlane.xlu0 %608
        %v610 = vsub.f32 %v593, %v600
        %v611 = vsub.f32 %v594, %v603
        %v612 = vsub.f32 %v595, %v606
        %v613 = vsub.f32 %v596, %v609
        %v614 = vmul.f32 %v610, 1.442695
        %v615 = vpow.pop %v614
        %v616 = vmul.f32 %v611, 1.442695
        %v617 = vpow.pop %v616
        %v618 = vmul.f32 %v612, 1.442695
        %v619 = vpow.pop %v618
        %v620 = vmul.f32 %v613, 1.442695
        %v621 = vpow.pop %v620
        %v622 = vsel %vm597, %v615, 0.0
        %623 = vadd.xlane.f32.xlu0 %v622
        %v624 = vpop.xlane.xlu0 %623
        %v625 = vsel %vm597, %v617, 0.0
        %626 = vadd.xlane.f32.xlu0 %v625
        %v627 = vpop.xlane.xlu0 %626
        %v628 = vsel %vm597, %v619, 0.0
        %629 = vadd.xlane.f32.xlu0 %v628
        %v630 = vpop.xlane.xlu0 %629
        %v631 = vsel %vm597, %v621, 0.0
        %632 = vadd.xlane.f32.xlu0 %v631
        %v633 = vpop.xlane.xlu0 %632
        %v634 = vrcp.pop %v624
        %v635 = vmul.f32 %v624, %v634
        %v636 = vsub.f32 1.0, %v635
        %v637 = vmul.f32 %v634, %v636
        %v638 = vadd.f32 %v634, %v637
        %vm639 = vweird.f32 %v624
        %vm640 = vweird.f32 %v634
        %vm641 = vmor %vm639, %vm640
        %v642 = vsel %vm641, %v634, %v638
        %v643 = vand.u32 2147483647, %v624
        %vm644 = vcmp.eq.f32.partialorder %v643, 8.507059e+37
        %v645 = vand.u32 %v624, 2147483648
        %v646 = vor.u32 1.1754944e-38, %v645
        %v647 = vsel %vm644, %v646, %v642
        %v648 = vmul.f32 %v615, %v647
        %v649 = vrcp.pop %v627
        %v650 = vmul.f32 %v627, %v649
        %v651 = vsub.f32 1.0, %v650
        %v652 = vmul.f32 %v649, %v651
        %v653 = vadd.f32 %v649, %v652
        %vm654 = vweird.f32 %v627
        %vm655 = vweird.f32 %v649
        %vm656 = vmor %vm654, %vm655
        %v657 = vsel %vm656, %v649, %v653
        %v658 = vand.u32 2147483647, %v627
        %vm659 = vcmp.eq.f32.partialorder %v658, 8.507059e+37
        %v660 = vand.u32 %v627, 2147483648
        %v661 = vor.u32 1.1754944e-38, %v660
        %v662 = vsel %vm659, %v661, %v657
        %v663 = vmul.f32 %v617, %v662
        %v664 = vrcp.pop %v630
        %v665 = vmul.f32 %v630, %v664
        %v666 = vsub.f32 1.0, %v665
        %v667 = vmul.f32 %v664, %v666
        %v668 = vadd.f32 %v664, %v667
        %vm669 = vweird.f32 %v630
        %vm670 = vweird.f32 %v664
        %vm671 = vmor %vm669, %vm670
        %v672 = vsel %vm671, %v664, %v668
        %v673 = vand.u32 2147483647, %v630
        %vm674 = vcmp.eq.f32.partialorder %v673, 8.507059e+37
        %v675 = vand.u32 %v630, 2147483648
        %v676 = vor.u32 1.1754944e-38, %v675
        %v677 = vsel %vm674, %v676, %v672
        %v678 = vmul.f32 %v619, %v677
        %v679 = vrcp.pop %v633
        %v680 = vmul.f32 %v633, %v679
        %v681 = vsub.f32 1.0, %v680
        %v682 = vmul.f32 %v679, %v681
        %v683 = vadd.f32 %v679, %v682
        %vm684 = vweird.f32 %v633
        %vm685 = vweird.f32 %v679
        %vm686 = vmor %vm684, %vm685
        %v687 = vsel %vm686, %v679, %v683
        %v688 = vand.u32 2147483647, %v633
        %vm689 = vcmp.eq.f32.partialorder %v688, 8.507059e+37
        %v690 = vand.u32 %v633, 2147483648
        %v691 = vor.u32 1.1754944e-38, %v690
        %v692 = vsel %vm689, %v691, %v687
        %v693 = vmul.f32 %v621, %v692
        %v695 = vsel %vm597, %v648, 0
        %697 = vmatpush.msra.mxu0 0.0
        %698 = vmatpush.msra.mxu0 0.0
        %699 = vmatpush.msra.mxu0 0.0
        %700 = vmatpush.msra.mxu0 0.0
        %701 = vmatpush.msra.mxu0 0.0
        %702 = vmatpush.msra.mxu0 0.0
        %703 = vmatpush.msra.mxu0 0.0
        %704 = vmatpush.msra.mxu0 0.0
        %705 = vmatpush.msra.mxu0 0.0
        %706 = vmatpush.msra.mxu0 0.0
        %707 = vmatpush.msra.mxu0 0.0
        %708 = vmatpush.msra.mxu0 0.0
        %709 = vmatpush.msra.mxu0 0.0
        %710 = vmatpush.msra.mxu0 0.0
        %711 = vmatpush.msra.mxu0 0.0
        %712 = vmatpush.msra.mxu0 %v426
        %713 = vmatmul.f32.gmra.mxu0 %v695
        %v714 = vpop.f32.mrf.mxu0
        %v715 = vadd.f32 0.0, %v714
        %716 = vdwg.mxu0
        %v718 = vsel %vm597, %v663, 0
        %720 = vmatpush.msra.mxu0 0.0
        %721 = vmatpush.msra.mxu0 0.0
        %722 = vmatpush.msra.mxu0 0.0
        %723 = vmatpush.msra.mxu0 0.0
        %724 = vmatpush.msra.mxu0 0.0
        %725 = vmatpush.msra.mxu0 0.0
        %726 = vmatpush.msra.mxu0 0.0
        %727 = vmatpush.msra.mxu0 0.0
        %728 = vmatpush.msra.mxu0 0.0
        %729 = vmatpush.msra.mxu0 0.0
        %730 = vmatpush.msra.mxu0 0.0
        %731 = vmatpush.msra.mxu0 0.0
        %732 = vmatpush.msra.mxu0 0.0
        %733 = vmatpush.msra.mxu0 0.0
        %734 = vmatpush.msra.mxu0 0.0
        %735 = vmatpush.msra.mxu0 %v429
        %736 = vmatmul.f32.gmra.mxu0 %v718
        %v737 = vpop.f32.mrf.mxu0
        %v738 = vadd.f32 0.0, %v737
        %739 = vdwg.mxu0
        %v741 = vsel %vm597, %v678, 0
        %743 = vmatpush.msra.mxu0 0.0
        %744 = vmatpush.msra.mxu0 0.0
        %745 = vmatpush.msra.mxu0 0.0
        %746 = vmatpush.msra.mxu0 0.0
        %747 = vmatpush.msra.mxu0 0.0
        %748 = vmatpush.msra.mxu0 0.0
        %749 = vmatpush.msra.mxu0 0.0
        %750 = vmatpush.msra.mxu0 0.0
        %751 = vmatpush.msra.mxu0 0.0
        %752 = vmatpush.msra.mxu0 0.0
        %753 = vmatpush.msra.mxu0 0.0
        %754 = vmatpush.msra.mxu0 0.0
        %755 = vmatpush.msra.mxu0 0.0
        %756 = vmatpush.msra.mxu0 0.0
        %757 = vmatpush.msra.mxu0 0.0
        %758 = vmatpush.msra.mxu0 %v432
        %759 = vmatmul.f32.gmra.mxu0 %v741
        %v760 = vpop.f32.mrf.mxu0
        %v761 = vadd.f32 0.0, %v760
        %762 = vdwg.mxu0
        %v764 = vsel %vm597, %v693, 0
        %766 = vmatpush.msra.mxu0 0.0
        %767 = vmatpush.msra.mxu0 0.0
        %768 = vmatpush.msra.mxu0 0.0
        %769 = vmatpush.msra.mxu0 0.0
        %770 = vmatpush.msra.mxu0 0.0
        %771 = vmatpush.msra.mxu0 0.0
        %772 = vmatpush.msra.mxu0 0.0
        %773 = vmatpush.msra.mxu0 0.0
        %774 = vmatpush.msra.mxu0 0.0
        %775 = vmatpush.msra.mxu0 0.0
        %776 = vmatpush.msra.mxu0 0.0
        %777 = vmatpush.msra.mxu0 0.0
        %778 = vmatpush.msra.mxu0 0.0
        %779 = vmatpush.msra.mxu0 0.0
        %780 = vmatpush.msra.mxu0 0.0
        %781 = vmatpush.msra.mxu0 %v435
        %782 = vmatmul.f32.gmra.mxu0 %v764
        %v783 = vpop.f32.mrf.mxu0
        %v784 = vadd.f32 0.0, %v783
        %785 = vdwg.mxu0
        %786 = vrot.lane.b32.xlu0 %v426, 63
        %v787 = vpop.permute.xlu0 %786
        %788 = vrot.lane.b32.xlu0 %v429, 63
        %v789 = vpop.permute.xlu0 %788
        %790 = vrot.lane.b32.xlu0 %v432, 63
        %v791 = vpop.permute.xlu0 %790
        %792 = vrot.lane.b32.xlu0 %v435, 63
        %v793 = vpop.permute.xlu0 %792
        %v798 = vsel %vm453, %v787, 1.0
        %v799 = vsel %vm453, %v789, 1.0
        %v800 = vsel %vm453, %v791, 1.0
        %v801 = vsel %vm453, %v793, 1.0
        %802 = vrot.lane.b32.xlu0 %v426, 60
        %v803 = vpop.permute.xlu0 %802
        %804 = vrot.lane.b32.xlu0 %v429, 60
        %v805 = vpop.permute.xlu0 %804
        %806 = vrot.lane.b32.xlu0 %v432, 60
        %v807 = vpop.permute.xlu0 %806
        %808 = vrot.lane.b32.xlu0 %v435, 60
        %v809 = vpop.permute.xlu0 %808
        %v814 = vsel %vm453, 1.0, %v803
        %v815 = vsel %vm453, 1.0, %v805
        %v816 = vsel %vm453, 1.0, %v807
        %v817 = vsel %vm453, 1.0, %v809
        %v819 = vsel %vm474, %v798, 0
        %v822 = vsel %vm474, %v814, 0
        %824 = vmatpush.xpose.msra.mxu0 0.0
        %825 = vmatpush.xpose.msra.mxu0 0.0
        %826 = vmatpush.xpose.msra.mxu0 0.0
        %827 = vmatpush.xpose.msra.mxu0 0.0
        %828 = vmatpush.xpose.msra.mxu0 0.0
        %829 = vmatpush.xpose.msra.mxu0 0.0
        %830 = vmatpush.xpose.msra.mxu0 0.0
        %831 = vmatpush.xpose.msra.mxu0 0.0
        %832 = vmatpush.xpose.msra.mxu0 0.0
        %833 = vmatpush.xpose.msra.mxu0 0.0
        %834 = vmatpush.xpose.msra.mxu0 0.0
        %835 = vmatpush.xpose.msra.mxu0 0.0
        %836 = vmatpush.xpose.msra.mxu0 0.0
        %837 = vmatpush.xpose.msra.mxu0 0.0
        %838 = vmatpush.xpose.msra.mxu0 0.0
        %839 = vmatpush.xpose.msra.mxu0 %v822
        %840 = vmatmul.f32.gmra.mxu0 %v819
        %v841 = vpop.f32.mrf.mxu0
        %v842 = vadd.f32 0.0, %v841
        %843 = vdwg.mxu0
        %v845 = vsel %vm474, %v799, 0
        %v848 = vsel %vm474, %v815, 0
        %850 = vmatpush.xpose.msra.mxu0 0.0
        %851 = vmatpush.xpose.msra.mxu0 0.0
        %852 = vmatpush.xpose.msra.mxu0 0.0
        %853 = vmatpush.xpose.msra.mxu0 0.0
        %854 = vmatpush.xpose.msra.mxu0 0.0
        %855 = vmatpush.xpose.msra.mxu0 0.0
        %856 = vmatpush.xpose.msra.mxu0 0.0
        %857 = vmatpush.xpose.msra.mxu0 0.0
        %858 = vmatpush.xpose.msra.mxu0 0.0
        %859 = vmatpush.xpose.msra.mxu0 0.0
        %860 = vmatpush.xpose.msra.mxu0 0.0
        %861 = vmatpush.xpose.msra.mxu0 0.0
        %862 = vmatpush.xpose.msra.mxu0 0.0
        %863 = vmatpush.xpose.msra.mxu0 0.0
        %864 = vmatpush.xpose.msra.mxu0 0.0
        %865 = vmatpush.xpose.msra.mxu0 %v848
        %866 = vmatmul.f32.gmra.mxu0 %v845
        %v867 = vpop.f32.mrf.mxu0
        %v868 = vadd.f32 0.0, %v867
        %869 = vdwg.mxu0
        %v871 = vsel %vm474, %v800, 0
        %v874 = vsel %vm474, %v816, 0
        %876 = vmatpush.xpose.msra.mxu0 0.0
        %877 = vmatpush.xpose.msra.mxu0 0.0
        %878 = vmatpush.xpose.msra.mxu0 0.0
        %879 = vmatpush.xpose.msra.mxu0 0.0
        %880 = vmatpush.xpose.msra.mxu0 0.0
        %881 = vmatpush.xpose.msra.mxu0 0.0
        %882 = vmatpush.xpose.msra.mxu0 0.0
        %883 = vmatpush.xpose.msra.mxu0 0.0
        %884 = vmatpush.xpose.msra.mxu0 0.0
        %885 = vmatpush.xpose.msra.mxu0 0.0
        %886 = vmatpush.xpose.msra.mxu0 0.0
        %887 = vmatpush.xpose.msra.mxu0 0.0
        %888 = vmatpush.xpose.msra.mxu0 0.0
        %889 = vmatpush.xpose.msra.mxu0 0.0
        %890 = vmatpush.xpose.msra.mxu0 0.0
        %891 = vmatpush.xpose.msra.mxu0 %v874
        %892 = vmatmul.f32.gmra.mxu0 %v871
        %v893 = vpop.f32.mrf.mxu0
        %v894 = vadd.f32 0.0, %v893
        %895 = vdwg.mxu0
        %v897 = vsel %vm474, %v801, 0
        %v900 = vsel %vm474, %v817, 0
        %902 = vmatpush.xpose.msra.mxu0 0.0
        %903 = vmatpush.xpose.msra.mxu0 0.0
        %904 = vmatpush.xpose.msra.mxu0 0.0
        %905 = vmatpush.xpose.msra.mxu0 0.0
        %906 = vmatpush.xpose.msra.mxu0 0.0
        %907 = vmatpush.xpose.msra.mxu0 0.0
        %908 = vmatpush.xpose.msra.mxu0 0.0
        %909 = vmatpush.xpose.msra.mxu0 0.0
        %910 = vmatpush.xpose.msra.mxu0 0.0
        %911 = vmatpush.xpose.msra.mxu0 0.0
        %912 = vmatpush.xpose.msra.mxu0 0.0
        %913 = vmatpush.xpose.msra.mxu0 0.0
        %914 = vmatpush.xpose.msra.mxu0 0.0
        %915 = vmatpush.xpose.msra.mxu0 0.0
        %916 = vmatpush.xpose.msra.mxu0 0.0
        %917 = vmatpush.xpose.msra.mxu0 %v900
        %918 = vmatmul.f32.gmra.mxu0 %v897
        %v919 = vpop.f32.mrf.mxu0
        %v920 = vadd.f32 0.0, %v919
        %921 = vdwg.mxu0
        %vm922 = vcmp.ge.f32.partialorder %v842, 0.0
        %vm923 = vcmp.ge.f32.partialorder %v868, 0.0
        %vm924 = vcmp.ge.f32.partialorder %v894, 0.0
        %vm925 = vcmp.ge.f32.partialorder %v920, 0.0
        %v926 = vmul.f32 %v842, 0.2
        %v927 = vmul.f32 %v868, 0.2
        %v928 = vmul.f32 %v894, 0.2
        %v929 = vmul.f32 %v920, 0.2
        %v930 = vsel %vm922, %v842, %v926
        %v931 = vsel %vm923, %v868, %v927
        %v932 = vsel %vm924, %v894, %v928
        %v933 = vsel %vm925, %v920, %v929
        %v934 = vsel %vm592, %v930, -1e+30
        %v935 = vsel %vm592, %v931, -1e+30
        %v936 = vsel %vm592, %v932, -1e+30
        %v937 = vsel %vm592, %v933, -1e+30
        %v938 = vsel %vm597, %v934, -inf
        %939 = vmax.xlane.f32.xlu0 %v938
        %v940 = vpop.xlane.xlu0 %939
        %v941 = vsel %vm597, %v935, -inf
        %942 = vmax.xlane.f32.xlu0 %v941
        %v943 = vpop.xlane.xlu0 %942
        %v944 = vsel %vm597, %v936, -inf
        %945 = vmax.xlane.f32.xlu0 %v944
        %v946 = vpop.xlane.xlu0 %945
        %v947 = vsel %vm597, %v937, -inf
        %948 = vmax.xlane.f32.xlu0 %v947
        %v949 = vpop.xlane.xlu0 %948
        %v950 = vsub.f32 %v934, %v940
        %v951 = vsub.f32 %v935, %v943
        %v952 = vsub.f32 %v936, %v946
        %v953 = vsub.f32 %v937, %v949
        %v954 = vmul.f32 %v950, 1.442695
        %v955 = vpow.pop %v954
        %v956 = vmul.f32 %v951, 1.442695
        %v957 = vpow.pop %v956
        %v958 = vmul.f32 %v952, 1.442695
        %v959 = vpow.pop %v958
        %v960 = vmul.f32 %v953, 1.442695
        %v961 = vpow.pop %v960
        %v962 = vsel %vm597, %v955, 0.0
        %963 = vadd.xlane.f32.xlu0 %v962
        %v964 = vpop.xlane.xlu0 %963
        %v965 = vsel %vm597, %v957, 0.0
        %966 = vadd.xlane.f32.xlu0 %v965
        %v967 = vpop.xlane.xlu0 %966
        %v968 = vsel %vm597, %v959, 0.0
        %969 = vadd.xlane.f32.xlu0 %v968
        %v970 = vpop.xlane.xlu0 %969
        %v971 = vsel %vm597, %v961, 0.0
        %972 = vadd.xlane.f32.xlu0 %v971
        %v973 = vpop.xlane.xlu0 %972
        %v974 = vrcp.pop %v964
        %v975 = vmul.f32 %v964, %v974
        %v976 = vsub.f32 1.0, %v975
        %v977 = vmul.f32 %v974, %v976
        %v978 = vadd.f32 %v974, %v977
        %vm979 = vweird.f32 %v964
        %vm980 = vweird.f32 %v974
        %vm981 = vmor %vm979, %vm980
        %v982 = vsel %vm981, %v974, %v978
        %v983 = vand.u32 2147483647, %v964
        %vm984 = vcmp.eq.f32.partialorder %v983, 8.507059e+37
        %v985 = vand.u32 %v964, 2147483648
        %v986 = vor.u32 1.1754944e-38, %v985
        %v987 = vsel %vm984, %v986, %v982
        %v988 = vmul.f32 %v955, %v987
        %v989 = vrcp.pop %v967
        %v990 = vmul.f32 %v967, %v989
        %v991 = vsub.f32 1.0, %v990
        %v992 = vmul.f32 %v989, %v991
        %v993 = vadd.f32 %v989, %v992
        %vm994 = vweird.f32 %v967
        %vm995 = vweird.f32 %v989
        %vm996 = vmor %vm994, %vm995
        %v997 = vsel %vm996, %v989, %v993
        %v998 = vand.u32 2147483647, %v967
        %vm999 = vcmp.eq.f32.partialorder %v998, 8.507059e+37
        %v1000 = vand.u32 %v967, 2147483648
        %v1001 = vor.u32 1.1754944e-38, %v1000
        %v1002 = vsel %vm999, %v1001, %v997
        %v1003 = vmul.f32 %v957, %v1002
        %v1004 = vrcp.pop %v970
        %v1005 = vmul.f32 %v970, %v1004
        %v1006 = vsub.f32 1.0, %v1005
        %v1007 = vmul.f32 %v1004, %v1006
        %v1008 = vadd.f32 %v1004, %v1007
        %vm1009 = vweird.f32 %v970
        %vm1010 = vweird.f32 %v1004
        %vm1011 = vmor %vm1009, %vm1010
        %v1012 = vsel %vm1011, %v1004, %v1008
        %v1013 = vand.u32 2147483647, %v970
        %vm1014 = vcmp.eq.f32.partialorder %v1013, 8.507059e+37
        %v1015 = vand.u32 %v970, 2147483648
        %v1016 = vor.u32 1.1754944e-38, %v1015
        %v1017 = vsel %vm1014, %v1016, %v1012
        %v1018 = vmul.f32 %v959, %v1017
        %v1019 = vrcp.pop %v973
        %v1020 = vmul.f32 %v973, %v1019
        %v1021 = vsub.f32 1.0, %v1020
        %v1022 = vmul.f32 %v1019, %v1021
        %v1023 = vadd.f32 %v1019, %v1022
        %vm1024 = vweird.f32 %v973
        %vm1025 = vweird.f32 %v1019
        %vm1026 = vmor %vm1024, %vm1025
        %v1027 = vsel %vm1026, %v1019, %v1023
        %v1028 = vand.u32 2147483647, %v973
        %vm1029 = vcmp.eq.f32.partialorder %v1028, 8.507059e+37
        %v1030 = vand.u32 %v973, 2147483648
        %v1031 = vor.u32 1.1754944e-38, %v1030
        %v1032 = vsel %vm1029, %v1031, %v1027
        %v1033 = vmul.f32 %v961, %v1032
        %1034 = vrot.lane.b32.xlu0 %v426, 112
        %v1035 = vpop.permute.xlu0 %1034
        %v1038 = vsel %vm597, %v988, 0
        %1040 = vmatpush.msra.mxu0 0.0
        %1041 = vmatpush.msra.mxu0 0.0
        %1042 = vmatpush.msra.mxu0 0.0
        %1043 = vmatpush.msra.mxu0 0.0
        %1044 = vmatpush.msra.mxu0 0.0
        %1045 = vmatpush.msra.mxu0 0.0
        %1046 = vmatpush.msra.mxu0 0.0
        %1047 = vmatpush.msra.mxu0 0.0
        %1048 = vmatpush.msra.mxu0 0.0
        %1049 = vmatpush.msra.mxu0 0.0
        %1050 = vmatpush.msra.mxu0 0.0
        %1051 = vmatpush.msra.mxu0 0.0
        %1052 = vmatpush.msra.mxu0 0.0
        %1053 = vmatpush.msra.mxu0 0.0
        %1054 = vmatpush.msra.mxu0 0.0
        %1055 = vmatpush.msra.mxu0 %v1035
        %1056 = vmatmul.f32.gmra.mxu0 %v1038
        %v1057 = vpop.f32.mrf.mxu0
        %v1058 = vadd.f32 0.0, %v1057
        %1059 = vdwg.mxu0
        %1060 = vrot.lane.b32.xlu0 %v429, 112
        %v1061 = vpop.permute.xlu0 %1060
        %v1064 = vsel %vm597, %v1003, 0
        %1066 = vmatpush.msra.mxu0 0.0
        %1067 = vmatpush.msra.mxu0 0.0
        %1068 = vmatpush.msra.mxu0 0.0
        %1069 = vmatpush.msra.mxu0 0.0
        %1070 = vmatpush.msra.mxu0 0.0
        %1071 = vmatpush.msra.mxu0 0.0
        %1072 = vmatpush.msra.mxu0 0.0
        %1073 = vmatpush.msra.mxu0 0.0
        %1074 = vmatpush.msra.mxu0 0.0
        %1075 = vmatpush.msra.mxu0 0.0
        %1076 = vmatpush.msra.mxu0 0.0
        %1077 = vmatpush.msra.mxu0 0.0
        %1078 = vmatpush.msra.mxu0 0.0
        %1079 = vmatpush.msra.mxu0 0.0
        %1080 = vmatpush.msra.mxu0 0.0
        %1081 = vmatpush.msra.mxu0 %v1061
        %1082 = vmatmul.f32.gmra.mxu0 %v1064
        %v1083 = vpop.f32.mrf.mxu0
        %v1084 = vadd.f32 0.0, %v1083
        %1085 = vdwg.mxu0
        %1086 = vrot.lane.b32.xlu0 %v432, 112
        %v1087 = vpop.permute.xlu0 %1086
        %v1090 = vsel %vm597, %v1018, 0
        %1092 = vmatpush.msra.mxu0 0.0
        %1093 = vmatpush.msra.mxu0 0.0
        %1094 = vmatpush.msra.mxu0 0.0
        %1095 = vmatpush.msra.mxu0 0.0
        %1096 = vmatpush.msra.mxu0 0.0
        %1097 = vmatpush.msra.mxu0 0.0
        %1098 = vmatpush.msra.mxu0 0.0
        %1099 = vmatpush.msra.mxu0 0.0
        %1100 = vmatpush.msra.mxu0 0.0
        %1101 = vmatpush.msra.mxu0 0.0
        %1102 = vmatpush.msra.mxu0 0.0
        %1103 = vmatpush.msra.mxu0 0.0
        %1104 = vmatpush.msra.mxu0 0.0
        %1105 = vmatpush.msra.mxu0 0.0
        %1106 = vmatpush.msra.mxu0 0.0
        %1107 = vmatpush.msra.mxu0 %v1087
        %1108 = vmatmul.f32.gmra.mxu0 %v1090
        %v1109 = vpop.f32.mrf.mxu0
        %v1110 = vadd.f32 0.0, %v1109
        %1111 = vdwg.mxu0
        %1112 = vrot.lane.b32.xlu0 %v435, 112
        %v1113 = vpop.permute.xlu0 %1112
        %v1116 = vsel %vm597, %v1033, 0
        %1118 = vmatpush.msra.mxu0 0.0
        %1119 = vmatpush.msra.mxu0 0.0
        %1120 = vmatpush.msra.mxu0 0.0
        %1121 = vmatpush.msra.mxu0 0.0
        %1122 = vmatpush.msra.mxu0 0.0
        %1123 = vmatpush.msra.mxu0 0.0
        %1124 = vmatpush.msra.mxu0 0.0
        %1125 = vmatpush.msra.mxu0 0.0
        %1126 = vmatpush.msra.mxu0 0.0
        %1127 = vmatpush.msra.mxu0 0.0
        %1128 = vmatpush.msra.mxu0 0.0
        %1129 = vmatpush.msra.mxu0 0.0
        %1130 = vmatpush.msra.mxu0 0.0
        %1131 = vmatpush.msra.mxu0 0.0
        %1132 = vmatpush.msra.mxu0 0.0
        %1133 = vmatpush.msra.mxu0 %v1113
        %1134 = vmatmul.f32.gmra.mxu0 %v1116
        %v1135 = vpop.f32.mrf.mxu0
        %v1136 = vadd.f32 0.0, %v1135
        %1137 = vdwg.mxu0
        %1138 = vrot.lane.b32.xlu0 %v426, 62
        %v1139 = vpop.permute.xlu0 %1138
        %1140 = vrot.lane.b32.xlu0 %v429, 62
        %v1141 = vpop.permute.xlu0 %1140
        %1142 = vrot.lane.b32.xlu0 %v432, 62
        %v1143 = vpop.permute.xlu0 %1142
        %1144 = vrot.lane.b32.xlu0 %v435, 62
        %v1145 = vpop.permute.xlu0 %1144
        %v1150 = vsel %vm453, %v1139, 1.0
        %v1151 = vsel %vm453, %v1141, 1.0
        %v1152 = vsel %vm453, %v1143, 1.0
        %v1153 = vsel %vm453, %v1145, 1.0
        %1154 = vrot.lane.b32.xlu0 %v426, 59
        %v1155 = vpop.permute.xlu0 %1154
        %1156 = vrot.lane.b32.xlu0 %v429, 59
        %v1157 = vpop.permute.xlu0 %1156
        %1158 = vrot.lane.b32.xlu0 %v432, 59
        %v1159 = vpop.permute.xlu0 %1158
        %1160 = vrot.lane.b32.xlu0 %v435, 59
        %v1161 = vpop.permute.xlu0 %1160
        %v1166 = vsel %vm453, 1.0, %v1155
        %v1167 = vsel %vm453, 1.0, %v1157
        %v1168 = vsel %vm453, 1.0, %v1159
        %v1169 = vsel %vm453, 1.0, %v1161
        %v1171 = vsel %vm474, %v1150, 0
        %v1174 = vsel %vm474, %v1166, 0
        %1176 = vmatpush.xpose.msra.mxu0 0.0
        %1177 = vmatpush.xpose.msra.mxu0 0.0
        %1178 = vmatpush.xpose.msra.mxu0 0.0
        %1179 = vmatpush.xpose.msra.mxu0 0.0
        %1180 = vmatpush.xpose.msra.mxu0 0.0
        %1181 = vmatpush.xpose.msra.mxu0 0.0
        %1182 = vmatpush.xpose.msra.mxu0 0.0
        %1183 = vmatpush.xpose.msra.mxu0 0.0
        %1184 = vmatpush.xpose.msra.mxu0 0.0
        %1185 = vmatpush.xpose.msra.mxu0 0.0
        %1186 = vmatpush.xpose.msra.mxu0 0.0
        %1187 = vmatpush.xpose.msra.mxu0 0.0
        %1188 = vmatpush.xpose.msra.mxu0 0.0
        %1189 = vmatpush.xpose.msra.mxu0 0.0
        %1190 = vmatpush.xpose.msra.mxu0 0.0
        %1191 = vmatpush.xpose.msra.mxu0 %v1174
        %1192 = vmatmul.f32.gmra.mxu0 %v1171
        %v1193 = vpop.f32.mrf.mxu0
        %v1194 = vadd.f32 0.0, %v1193
        %1195 = vdwg.mxu0
        %v1197 = vsel %vm474, %v1151, 0
        %v1200 = vsel %vm474, %v1167, 0
        %1202 = vmatpush.xpose.msra.mxu0 0.0
        %1203 = vmatpush.xpose.msra.mxu0 0.0
        %1204 = vmatpush.xpose.msra.mxu0 0.0
        %1205 = vmatpush.xpose.msra.mxu0 0.0
        %1206 = vmatpush.xpose.msra.mxu0 0.0
        %1207 = vmatpush.xpose.msra.mxu0 0.0
        %1208 = vmatpush.xpose.msra.mxu0 0.0
        %1209 = vmatpush.xpose.msra.mxu0 0.0
        %1210 = vmatpush.xpose.msra.mxu0 0.0
        %1211 = vmatpush.xpose.msra.mxu0 0.0
        %1212 = vmatpush.xpose.msra.mxu0 0.0
        %1213 = vmatpush.xpose.msra.mxu0 0.0
        %1214 = vmatpush.xpose.msra.mxu0 0.0
        %1215 = vmatpush.xpose.msra.mxu0 0.0
        %1216 = vmatpush.xpose.msra.mxu0 0.0
        %1217 = vmatpush.xpose.msra.mxu0 %v1200
        %1218 = vmatmul.f32.gmra.mxu0 %v1197
        %v1219 = vpop.f32.mrf.mxu0
        %v1220 = vadd.f32 0.0, %v1219
        %1221 = vdwg.mxu0
        %v1223 = vsel %vm474, %v1152, 0
        %v1226 = vsel %vm474, %v1168, 0
        %1228 = vmatpush.xpose.msra.mxu0 0.0
        %1229 = vmatpush.xpose.msra.mxu0 0.0
        %1230 = vmatpush.xpose.msra.mxu0 0.0
        %1231 = vmatpush.xpose.msra.mxu0 0.0
        %1232 = vmatpush.xpose.msra.mxu0 0.0
        %1233 = vmatpush.xpose.msra.mxu0 0.0
        %1234 = vmatpush.xpose.msra.mxu0 0.0
        %1235 = vmatpush.xpose.msra.mxu0 0.0
        %1236 = vmatpush.xpose.msra.mxu0 0.0
        %1237 = vmatpush.xpose.msra.mxu0 0.0
        %1238 = vmatpush.xpose.msra.mxu0 0.0
        %1239 = vmatpush.xpose.msra.mxu0 0.0
        %1240 = vmatpush.xpose.msra.mxu0 0.0
        %1241 = vmatpush.xpose.msra.mxu0 0.0
        %1242 = vmatpush.xpose.msra.mxu0 0.0
        %1243 = vmatpush.xpose.msra.mxu0 %v1226
        %1244 = vmatmul.f32.gmra.mxu0 %v1223
        %v1245 = vpop.f32.mrf.mxu0
        %v1246 = vadd.f32 0.0, %v1245
        %1247 = vdwg.mxu0
        %v1249 = vsel %vm474, %v1153, 0
        %v1252 = vsel %vm474, %v1169, 0
        %1254 = vmatpush.xpose.msra.mxu0 0.0
        %1255 = vmatpush.xpose.msra.mxu0 0.0
        %1256 = vmatpush.xpose.msra.mxu0 0.0
        %1257 = vmatpush.xpose.msra.mxu0 0.0
        %1258 = vmatpush.xpose.msra.mxu0 0.0
        %1259 = vmatpush.xpose.msra.mxu0 0.0
        %1260 = vmatpush.xpose.msra.mxu0 0.0
        %1261 = vmatpush.xpose.msra.mxu0 0.0
        %1262 = vmatpush.xpose.msra.mxu0 0.0
        %1263 = vmatpush.xpose.msra.mxu0 0.0
        %1264 = vmatpush.xpose.msra.mxu0 0.0
        %1265 = vmatpush.xpose.msra.mxu0 0.0
        %1266 = vmatpush.xpose.msra.mxu0 0.0
        %1267 = vmatpush.xpose.msra.mxu0 0.0
        %1268 = vmatpush.xpose.msra.mxu0 0.0
        %1269 = vmatpush.xpose.msra.mxu0 %v1252
        %1270 = vmatmul.f32.gmra.mxu0 %v1249
        %v1271 = vpop.f32.mrf.mxu0
        %v1272 = vadd.f32 0.0, %v1271
        %1273 = vdwg.mxu0
        %vm1274 = vcmp.ge.f32.partialorder %v1194, 0.0
        %vm1275 = vcmp.ge.f32.partialorder %v1220, 0.0
        %vm1276 = vcmp.ge.f32.partialorder %v1246, 0.0
        %vm1277 = vcmp.ge.f32.partialorder %v1272, 0.0
        %v1278 = vmul.f32 %v1194, 0.2
        %v1279 = vmul.f32 %v1220, 0.2
        %v1280 = vmul.f32 %v1246, 0.2
        %v1281 = vmul.f32 %v1272, 0.2
        %v1282 = vsel %vm1274, %v1194, %v1278
        %v1283 = vsel %vm1275, %v1220, %v1279
        %v1284 = vsel %vm1276, %v1246, %v1280
        %v1285 = vsel %vm1277, %v1272, %v1281
        %v1286 = vsel %vm592, %v1282, -1e+30
        %v1287 = vsel %vm592, %v1283, -1e+30
        %v1288 = vsel %vm592, %v1284, -1e+30
        %v1289 = vsel %vm592, %v1285, -1e+30
        %v1290 = vsel %vm597, %v1286, -inf
        %1291 = vmax.xlane.f32.xlu0 %v1290
        %v1292 = vpop.xlane.xlu0 %1291
        %v1293 = vsel %vm597, %v1287, -inf
        %1294 = vmax.xlane.f32.xlu0 %v1293
        %v1295 = vpop.xlane.xlu0 %1294
        %v1296 = vsel %vm597, %v1288, -inf
        %1297 = vmax.xlane.f32.xlu0 %v1296
        %v1298 = vpop.xlane.xlu0 %1297
        %v1299 = vsel %vm597, %v1289, -inf
        %1300 = vmax.xlane.f32.xlu0 %v1299
        %v1301 = vpop.xlane.xlu0 %1300
        %v1302 = vsub.f32 %v1286, %v1292
        %v1303 = vsub.f32 %v1287, %v1295
        %v1304 = vsub.f32 %v1288, %v1298
        %v1305 = vsub.f32 %v1289, %v1301
        %v1306 = vmul.f32 %v1302, 1.442695
        %v1307 = vpow.pop %v1306
        %v1308 = vmul.f32 %v1303, 1.442695
        %v1309 = vpow.pop %v1308
        %v1310 = vmul.f32 %v1304, 1.442695
        %v1311 = vpow.pop %v1310
        %v1312 = vmul.f32 %v1305, 1.442695
        %v1313 = vpow.pop %v1312
        %v1314 = vsel %vm597, %v1307, 0.0
        %1315 = vadd.xlane.f32.xlu0 %v1314
        %v1316 = vpop.xlane.xlu0 %1315
        %v1317 = vsel %vm597, %v1309, 0.0
        %1318 = vadd.xlane.f32.xlu0 %v1317
        %v1319 = vpop.xlane.xlu0 %1318
        %v1320 = vsel %vm597, %v1311, 0.0
        %1321 = vadd.xlane.f32.xlu0 %v1320
        %v1322 = vpop.xlane.xlu0 %1321
        %v1323 = vsel %vm597, %v1313, 0.0
        %1324 = vadd.xlane.f32.xlu0 %v1323
        %v1325 = vpop.xlane.xlu0 %1324
        %v1326 = vrcp.pop %v1316
        %v1327 = vmul.f32 %v1316, %v1326
        %v1328 = vsub.f32 1.0, %v1327
        %v1329 = vmul.f32 %v1326, %v1328
        %v1330 = vadd.f32 %v1326, %v1329
        %vm1331 = vweird.f32 %v1316
        %vm1332 = vweird.f32 %v1326
        %vm1333 = vmor %vm1331, %vm1332
        %v1334 = vsel %vm1333, %v1326, %v1330
        %v1335 = vand.u32 2147483647, %v1316
        %vm1336 = vcmp.eq.f32.partialorder %v1335, 8.507059e+37
        %v1337 = vand.u32 %v1316, 2147483648
        %v1338 = vor.u32 1.1754944e-38, %v1337
        %v1339 = vsel %vm1336, %v1338, %v1334
        %v1340 = vmul.f32 %v1307, %v1339
        %v1341 = vrcp.pop %v1319
        %v1342 = vmul.f32 %v1319, %v1341
        %v1343 = vsub.f32 1.0, %v1342
        %v1344 = vmul.f32 %v1341, %v1343
        %v1345 = vadd.f32 %v1341, %v1344
        %vm1346 = vweird.f32 %v1319
        %vm1347 = vweird.f32 %v1341
        %vm1348 = vmor %vm1346, %vm1347
        %v1349 = vsel %vm1348, %v1341, %v1345
        %v1350 = vand.u32 2147483647, %v1319
        %vm1351 = vcmp.eq.f32.partialorder %v1350, 8.507059e+37
        %v1352 = vand.u32 %v1319, 2147483648
        %v1353 = vor.u32 1.1754944e-38, %v1352
        %v1354 = vsel %vm1351, %v1353, %v1349
        %v1355 = vmul.f32 %v1309, %v1354
        %v1356 = vrcp.pop %v1322
        %v1357 = vmul.f32 %v1322, %v1356
        %v1358 = vsub.f32 1.0, %v1357
        %v1359 = vmul.f32 %v1356, %v1358
        %v1360 = vadd.f32 %v1356, %v1359
        %vm1361 = vweird.f32 %v1322
        %vm1362 = vweird.f32 %v1356
        %vm1363 = vmor %vm1361, %vm1362
        %v1364 = vsel %vm1363, %v1356, %v1360
        %v1365 = vand.u32 2147483647, %v1322
        %vm1366 = vcmp.eq.f32.partialorder %v1365, 8.507059e+37
        %v1367 = vand.u32 %v1322, 2147483648
        %v1368 = vor.u32 1.1754944e-38, %v1367
        %v1369 = vsel %vm1366, %v1368, %v1364
        %v1370 = vmul.f32 %v1311, %v1369
        %v1371 = vrcp.pop %v1325
        %v1372 = vmul.f32 %v1325, %v1371
        %v1373 = vsub.f32 1.0, %v1372
        %v1374 = vmul.f32 %v1371, %v1373
        %v1375 = vadd.f32 %v1371, %v1374
        %vm1376 = vweird.f32 %v1325
        %vm1377 = vweird.f32 %v1371
        %vm1378 = vmor %vm1376, %vm1377
        %v1379 = vsel %vm1378, %v1371, %v1375
        %v1380 = vand.u32 2147483647, %v1325
        %vm1381 = vcmp.eq.f32.partialorder %v1380, 8.507059e+37
        %v1382 = vand.u32 %v1325, 2147483648
        %v1383 = vor.u32 1.1754944e-38, %v1382
        %v1384 = vsel %vm1381, %v1383, %v1379
        %v1385 = vmul.f32 %v1313, %v1384
        %1386 = vrot.lane.b32.xlu0 %v426, 96
        %v1387 = vpop.permute.xlu0 %1386
        %v1390 = vsel %vm597, %v1340, 0
        %1392 = vmatpush.msra.mxu0 0.0
        %1393 = vmatpush.msra.mxu0 0.0
        %1394 = vmatpush.msra.mxu0 0.0
        %1395 = vmatpush.msra.mxu0 0.0
        %1396 = vmatpush.msra.mxu0 0.0
        %1397 = vmatpush.msra.mxu0 0.0
        %1398 = vmatpush.msra.mxu0 0.0
        %1399 = vmatpush.msra.mxu0 0.0
        %1400 = vmatpush.msra.mxu0 0.0
        %1401 = vmatpush.msra.mxu0 0.0
        %1402 = vmatpush.msra.mxu0 0.0
        %1403 = vmatpush.msra.mxu0 0.0
        %1404 = vmatpush.msra.mxu0 0.0
        %1405 = vmatpush.msra.mxu0 0.0
        %1406 = vmatpush.msra.mxu0 0.0
        %1407 = vmatpush.msra.mxu0 %v1387
        %1408 = vmatmul.f32.gmra.mxu0 %v1390
        %v1409 = vpop.f32.mrf.mxu0
        %v1410 = vadd.f32 0.0, %v1409
        %1411 = vdwg.mxu0
        %1412 = vrot.lane.b32.xlu0 %v429, 96
        %v1413 = vpop.permute.xlu0 %1412
        %v1416 = vsel %vm597, %v1355, 0
        %1418 = vmatpush.msra.mxu0 0.0
        %1419 = vmatpush.msra.mxu0 0.0
        %1420 = vmatpush.msra.mxu0 0.0
        %1421 = vmatpush.msra.mxu0 0.0
        %1422 = vmatpush.msra.mxu0 0.0
        %1423 = vmatpush.msra.mxu0 0.0
        %1424 = vmatpush.msra.mxu0 0.0
        %1425 = vmatpush.msra.mxu0 0.0
        %1426 = vmatpush.msra.mxu0 0.0
        %1427 = vmatpush.msra.mxu0 0.0
        %1428 = vmatpush.msra.mxu0 0.0
        %1429 = vmatpush.msra.mxu0 0.0
        %1430 = vmatpush.msra.mxu0 0.0
        %1431 = vmatpush.msra.mxu0 0.0
        %1432 = vmatpush.msra.mxu0 0.0
        %1433 = vmatpush.msra.mxu0 %v1413
        %1434 = vmatmul.f32.gmra.mxu0 %v1416
        %v1435 = vpop.f32.mrf.mxu0
        %v1436 = vadd.f32 0.0, %v1435
        %1437 = vdwg.mxu0
        %1438 = vrot.lane.b32.xlu0 %v432, 96
        %v1439 = vpop.permute.xlu0 %1438
        %v1442 = vsel %vm597, %v1370, 0
        %1444 = vmatpush.msra.mxu0 0.0
        %1445 = vmatpush.msra.mxu0 0.0
        %1446 = vmatpush.msra.mxu0 0.0
        %1447 = vmatpush.msra.mxu0 0.0
        %1448 = vmatpush.msra.mxu0 0.0
        %1449 = vmatpush.msra.mxu0 0.0
        %1450 = vmatpush.msra.mxu0 0.0
        %1451 = vmatpush.msra.mxu0 0.0
        %1452 = vmatpush.msra.mxu0 0.0
        %1453 = vmatpush.msra.mxu0 0.0
        %1454 = vmatpush.msra.mxu0 0.0
        %1455 = vmatpush.msra.mxu0 0.0
        %1456 = vmatpush.msra.mxu0 0.0
        %1457 = vmatpush.msra.mxu0 0.0
        %1458 = vmatpush.msra.mxu0 0.0
        %1459 = vmatpush.msra.mxu0 %v1439
        %1460 = vmatmul.f32.gmra.mxu0 %v1442
        %v1461 = vpop.f32.mrf.mxu0
        %v1462 = vadd.f32 0.0, %v1461
        %1463 = vdwg.mxu0
        %1464 = vrot.lane.b32.xlu0 %v435, 96
        %v1465 = vpop.permute.xlu0 %1464
        %v1468 = vsel %vm597, %v1385, 0
        %1470 = vmatpush.msra.mxu0 0.0
        %1471 = vmatpush.msra.mxu0 0.0
        %1472 = vmatpush.msra.mxu0 0.0
        %1473 = vmatpush.msra.mxu0 0.0
        %1474 = vmatpush.msra.mxu0 0.0
        %1475 = vmatpush.msra.mxu0 0.0
        %1476 = vmatpush.msra.mxu0 0.0
        %1477 = vmatpush.msra.mxu0 0.0
        %1478 = vmatpush.msra.mxu0 0.0
        %1479 = vmatpush.msra.mxu0 0.0
        %1480 = vmatpush.msra.mxu0 0.0
        %1481 = vmatpush.msra.mxu0 0.0
        %1482 = vmatpush.msra.mxu0 0.0
        %1483 = vmatpush.msra.mxu0 0.0
        %1484 = vmatpush.msra.mxu0 0.0
        %1485 = vmatpush.msra.mxu0 %v1465
        %1486 = vmatmul.f32.gmra.mxu0 %v1468
        %v1487 = vpop.f32.mrf.mxu0
        %v1488 = vadd.f32 0.0, %v1487
        %1489 = vdwg.mxu0
        %v1490 = vsel %vm453, %v459, 1.0
        %v1491 = vsel %vm453, %v461, 1.0
        %v1492 = vsel %vm453, %v463, 1.0
        %v1493 = vsel %vm453, %v465, 1.0
        %1494 = vrot.lane.b32.xlu0 %v426, 58
        %v1495 = vpop.permute.xlu0 %1494
        %1496 = vrot.lane.b32.xlu0 %v429, 58
        %v1497 = vpop.permute.xlu0 %1496
        %1498 = vrot.lane.b32.xlu0 %v432, 58
        %v1499 = vpop.permute.xlu0 %1498
        %1500 = vrot.lane.b32.xlu0 %v435, 58
        %v1501 = vpop.permute.xlu0 %1500
        %v1506 = vsel %vm453, 1.0, %v1495
        %v1507 = vsel %vm453, 1.0, %v1497
        %v1508 = vsel %vm453, 1.0, %v1499
        %v1509 = vsel %vm453, 1.0, %v1501
        %v1511 = vsel %vm474, %v1490, 0
        %v1514 = vsel %vm474, %v1506, 0
        %1516 = vmatpush.xpose.msra.mxu0 0.0
        %1517 = vmatpush.xpose.msra.mxu0 0.0
        %1518 = vmatpush.xpose.msra.mxu0 0.0
        %1519 = vmatpush.xpose.msra.mxu0 0.0
        %1520 = vmatpush.xpose.msra.mxu0 0.0
        %1521 = vmatpush.xpose.msra.mxu0 0.0
        %1522 = vmatpush.xpose.msra.mxu0 0.0
        %1523 = vmatpush.xpose.msra.mxu0 0.0
        %1524 = vmatpush.xpose.msra.mxu0 0.0
        %1525 = vmatpush.xpose.msra.mxu0 0.0
        %1526 = vmatpush.xpose.msra.mxu0 0.0
        %1527 = vmatpush.xpose.msra.mxu0 0.0
        %1528 = vmatpush.xpose.msra.mxu0 0.0
        %1529 = vmatpush.xpose.msra.mxu0 0.0
        %1530 = vmatpush.xpose.msra.mxu0 0.0
        %1531 = vmatpush.xpose.msra.mxu0 %v1514
        %1532 = vmatmul.f32.gmra.mxu0 %v1511
        %v1533 = vpop.f32.mrf.mxu0
        %v1534 = vadd.f32 0.0, %v1533
        %1535 = vdwg.mxu0
        %v1537 = vsel %vm474, %v1491, 0
        %v1540 = vsel %vm474, %v1507, 0
        %1542 = vmatpush.xpose.msra.mxu0 0.0
        %1543 = vmatpush.xpose.msra.mxu0 0.0
        %1544 = vmatpush.xpose.msra.mxu0 0.0
        %1545 = vmatpush.xpose.msra.mxu0 0.0
        %1546 = vmatpush.xpose.msra.mxu0 0.0
        %1547 = vmatpush.xpose.msra.mxu0 0.0
        %1548 = vmatpush.xpose.msra.mxu0 0.0
        %1549 = vmatpush.xpose.msra.mxu0 0.0
        %1550 = vmatpush.xpose.msra.mxu0 0.0
        %1551 = vmatpush.xpose.msra.mxu0 0.0
        %1552 = vmatpush.xpose.msra.mxu0 0.0
        %1553 = vmatpush.xpose.msra.mxu0 0.0
        %1554 = vmatpush.xpose.msra.mxu0 0.0
        %1555 = vmatpush.xpose.msra.mxu0 0.0
        %1556 = vmatpush.xpose.msra.mxu0 0.0
        %1557 = vmatpush.xpose.msra.mxu0 %v1540
        %1558 = vmatmul.f32.gmra.mxu0 %v1537
        %v1559 = vpop.f32.mrf.mxu0
        %v1560 = vadd.f32 0.0, %v1559
        %1561 = vdwg.mxu0
        %v1563 = vsel %vm474, %v1492, 0
        %v1566 = vsel %vm474, %v1508, 0
        %1568 = vmatpush.xpose.msra.mxu0 0.0
        %1569 = vmatpush.xpose.msra.mxu0 0.0
        %1570 = vmatpush.xpose.msra.mxu0 0.0
        %1571 = vmatpush.xpose.msra.mxu0 0.0
        %1572 = vmatpush.xpose.msra.mxu0 0.0
        %1573 = vmatpush.xpose.msra.mxu0 0.0
        %1574 = vmatpush.xpose.msra.mxu0 0.0
        %1575 = vmatpush.xpose.msra.mxu0 0.0
        %1576 = vmatpush.xpose.msra.mxu0 0.0
        %1577 = vmatpush.xpose.msra.mxu0 0.0
        %1578 = vmatpush.xpose.msra.mxu0 0.0
        %1579 = vmatpush.xpose.msra.mxu0 0.0
        %1580 = vmatpush.xpose.msra.mxu0 0.0
        %1581 = vmatpush.xpose.msra.mxu0 0.0
        %1582 = vmatpush.xpose.msra.mxu0 0.0
        %1583 = vmatpush.xpose.msra.mxu0 %v1566
        %1584 = vmatmul.f32.gmra.mxu0 %v1563
        %v1585 = vpop.f32.mrf.mxu0
        %v1586 = vadd.f32 0.0, %v1585
        %1587 = vdwg.mxu0
        %v1589 = vsel %vm474, %v1493, 0
        %v1592 = vsel %vm474, %v1509, 0
        %1594 = vmatpush.xpose.msra.mxu0 0.0
        %1595 = vmatpush.xpose.msra.mxu0 0.0
        %1596 = vmatpush.xpose.msra.mxu0 0.0
        %1597 = vmatpush.xpose.msra.mxu0 0.0
        %1598 = vmatpush.xpose.msra.mxu0 0.0
        %1599 = vmatpush.xpose.msra.mxu0 0.0
        %1600 = vmatpush.xpose.msra.mxu0 0.0
        %1601 = vmatpush.xpose.msra.mxu0 0.0
        %1602 = vmatpush.xpose.msra.mxu0 0.0
        %1603 = vmatpush.xpose.msra.mxu0 0.0
        %1604 = vmatpush.xpose.msra.mxu0 0.0
        %1605 = vmatpush.xpose.msra.mxu0 0.0
        %1606 = vmatpush.xpose.msra.mxu0 0.0
        %1607 = vmatpush.xpose.msra.mxu0 0.0
        %1608 = vmatpush.xpose.msra.mxu0 0.0
        %1609 = vmatpush.xpose.msra.mxu0 %v1592
        %1610 = vmatmul.f32.gmra.mxu0 %v1589
        %v1611 = vpop.f32.mrf.mxu0
        %v1612 = vadd.f32 0.0, %v1611
        %1613 = vdwg.mxu0
        %vm1614 = vcmp.ge.f32.partialorder %v1534, 0.0
        %vm1615 = vcmp.ge.f32.partialorder %v1560, 0.0
        %vm1616 = vcmp.ge.f32.partialorder %v1586, 0.0
        %vm1617 = vcmp.ge.f32.partialorder %v1612, 0.0
        %v1618 = vmul.f32 %v1534, 0.2
        %v1619 = vmul.f32 %v1560, 0.2
        %v1620 = vmul.f32 %v1586, 0.2
        %v1621 = vmul.f32 %v1612, 0.2
        %v1622 = vsel %vm1614, %v1534, %v1618
        %v1623 = vsel %vm1615, %v1560, %v1619
        %v1624 = vsel %vm1616, %v1586, %v1620
        %v1625 = vsel %vm1617, %v1612, %v1621
        %v1626 = vsel %vm592, %v1622, -1e+30
        %v1627 = vsel %vm592, %v1623, -1e+30
        %v1628 = vsel %vm592, %v1624, -1e+30
        %v1629 = vsel %vm592, %v1625, -1e+30
        %v1630 = vsel %vm597, %v1626, -inf
        %1631 = vmax.xlane.f32.xlu0 %v1630
        %v1632 = vpop.xlane.xlu0 %1631
        %v1633 = vsel %vm597, %v1627, -inf
        %1634 = vmax.xlane.f32.xlu0 %v1633
        %v1635 = vpop.xlane.xlu0 %1634
        %v1636 = vsel %vm597, %v1628, -inf
        %1637 = vmax.xlane.f32.xlu0 %v1636
        %v1638 = vpop.xlane.xlu0 %1637
        %v1639 = vsel %vm597, %v1629, -inf
        %1640 = vmax.xlane.f32.xlu0 %v1639
        %v1641 = vpop.xlane.xlu0 %1640
        %v1642 = vsub.f32 %v1626, %v1632
        %v1643 = vsub.f32 %v1627, %v1635
        %v1644 = vsub.f32 %v1628, %v1638
        %v1645 = vsub.f32 %v1629, %v1641
        %v1646 = vmul.f32 %v1642, 1.442695
        %v1647 = vpow.pop %v1646
        %v1648 = vmul.f32 %v1643, 1.442695
        %v1649 = vpow.pop %v1648
        %v1650 = vmul.f32 %v1644, 1.442695
        %v1651 = vpow.pop %v1650
        %v1652 = vmul.f32 %v1645, 1.442695
        %v1653 = vpow.pop %v1652
        %v1654 = vsel %vm597, %v1647, 0.0
        %1655 = vadd.xlane.f32.xlu0 %v1654
        %v1656 = vpop.xlane.xlu0 %1655
        %v1657 = vsel %vm597, %v1649, 0.0
        %1658 = vadd.xlane.f32.xlu0 %v1657
        %v1659 = vpop.xlane.xlu0 %1658
        %v1660 = vsel %vm597, %v1651, 0.0
        %1661 = vadd.xlane.f32.xlu0 %v1660
        %v1662 = vpop.xlane.xlu0 %1661
        %v1663 = vsel %vm597, %v1653, 0.0
        %1664 = vadd.xlane.f32.xlu0 %v1663
        %v1665 = vpop.xlane.xlu0 %1664
        %v1666 = vrcp.pop %v1656
        %v1667 = vmul.f32 %v1656, %v1666
        %v1668 = vsub.f32 1.0, %v1667
        %v1669 = vmul.f32 %v1666, %v1668
        %v1670 = vadd.f32 %v1666, %v1669
        %vm1671 = vweird.f32 %v1656
        %vm1672 = vweird.f32 %v1666
        %vm1673 = vmor %vm1671, %vm1672
        %v1674 = vsel %vm1673, %v1666, %v1670
        %v1675 = vand.u32 2147483647, %v1656
        %vm1676 = vcmp.eq.f32.partialorder %v1675, 8.507059e+37
        %v1677 = vand.u32 %v1656, 2147483648
        %v1678 = vor.u32 1.1754944e-38, %v1677
        %v1679 = vsel %vm1676, %v1678, %v1674
        %v1680 = vmul.f32 %v1647, %v1679
        %v1681 = vrcp.pop %v1659
        %v1682 = vmul.f32 %v1659, %v1681
        %v1683 = vsub.f32 1.0, %v1682
        %v1684 = vmul.f32 %v1681, %v1683
        %v1685 = vadd.f32 %v1681, %v1684
        %vm1686 = vweird.f32 %v1659
        %vm1687 = vweird.f32 %v1681
        %vm1688 = vmor %vm1686, %vm1687
        %v1689 = vsel %vm1688, %v1681, %v1685
        %v1690 = vand.u32 2147483647, %v1659
        %vm1691 = vcmp.eq.f32.partialorder %v1690, 8.507059e+37
        %v1692 = vand.u32 %v1659, 2147483648
        %v1693 = vor.u32 1.1754944e-38, %v1692
        %v1694 = vsel %vm1691, %v1693, %v1689
        %v1695 = vmul.f32 %v1649, %v1694
        %v1696 = vrcp.pop %v1662
        %v1697 = vmul.f32 %v1662, %v1696
        %v1698 = vsub.f32 1.0, %v1697
        %v1699 = vmul.f32 %v1696, %v1698
        %v1700 = vadd.f32 %v1696, %v1699
        %vm1701 = vweird.f32 %v1662
        %vm1702 = vweird.f32 %v1696
        %vm1703 = vmor %vm1701, %vm1702
        %v1704 = vsel %vm1703, %v1696, %v1700
        %v1705 = vand.u32 2147483647, %v1662
        %vm1706 = vcmp.eq.f32.partialorder %v1705, 8.507059e+37
        %v1707 = vand.u32 %v1662, 2147483648
        %v1708 = vor.u32 1.1754944e-38, %v1707
        %v1709 = vsel %vm1706, %v1708, %v1704
        %v1710 = vmul.f32 %v1651, %v1709
        %v1711 = vrcp.pop %v1665
        %v1712 = vmul.f32 %v1665, %v1711
        %v1713 = vsub.f32 1.0, %v1712
        %v1714 = vmul.f32 %v1711, %v1713
        %v1715 = vadd.f32 %v1711, %v1714
        %vm1716 = vweird.f32 %v1665
        %vm1717 = vweird.f32 %v1711
        %vm1718 = vmor %vm1716, %vm1717
        %v1719 = vsel %vm1718, %v1711, %v1715
        %v1720 = vand.u32 2147483647, %v1665
        %vm1721 = vcmp.eq.f32.partialorder %v1720, 8.507059e+37
        %v1722 = vand.u32 %v1665, 2147483648
        %v1723 = vor.u32 1.1754944e-38, %v1722
        %v1724 = vsel %vm1721, %v1723, %v1719
        %v1725 = vmul.f32 %v1653, %v1724
        %1726 = vrot.lane.b32.xlu0 %v426, 80
        %v1727 = vpop.permute.xlu0 %1726
        %v1730 = vsel %vm597, %v1680, 0
        %1732 = vmatpush.msra.mxu0 0.0
        %1733 = vmatpush.msra.mxu0 0.0
        %1734 = vmatpush.msra.mxu0 0.0
        %1735 = vmatpush.msra.mxu0 0.0
        %1736 = vmatpush.msra.mxu0 0.0
        %1737 = vmatpush.msra.mxu0 0.0
        %1738 = vmatpush.msra.mxu0 0.0
        %1739 = vmatpush.msra.mxu0 0.0
        %1740 = vmatpush.msra.mxu0 0.0
        %1741 = vmatpush.msra.mxu0 0.0
        %1742 = vmatpush.msra.mxu0 0.0
        %1743 = vmatpush.msra.mxu0 0.0
        %1744 = vmatpush.msra.mxu0 0.0
        %1745 = vmatpush.msra.mxu0 0.0
        %1746 = vmatpush.msra.mxu0 0.0
        %1747 = vmatpush.msra.mxu0 %v1727
        %1748 = vmatmul.f32.gmra.mxu0 %v1730
        %v1749 = vpop.f32.mrf.mxu0
        %v1750 = vadd.f32 0.0, %v1749
        %1751 = vdwg.mxu0
        %1752 = vrot.lane.b32.xlu0 %v429, 80
        %v1753 = vpop.permute.xlu0 %1752
        %v1756 = vsel %vm597, %v1695, 0
        %1758 = vmatpush.msra.mxu0 0.0
        %1759 = vmatpush.msra.mxu0 0.0
        %1760 = vmatpush.msra.mxu0 0.0
        %1761 = vmatpush.msra.mxu0 0.0
        %1762 = vmatpush.msra.mxu0 0.0
        %1763 = vmatpush.msra.mxu0 0.0
        %1764 = vmatpush.msra.mxu0 0.0
        %1765 = vmatpush.msra.mxu0 0.0
        %1766 = vmatpush.msra.mxu0 0.0
        %1767 = vmatpush.msra.mxu0 0.0
        %1768 = vmatpush.msra.mxu0 0.0
        %1769 = vmatpush.msra.mxu0 0.0
        %1770 = vmatpush.msra.mxu0 0.0
        %1771 = vmatpush.msra.mxu0 0.0
        %1772 = vmatpush.msra.mxu0 0.0
        %1773 = vmatpush.msra.mxu0 %v1753
        %1774 = vmatmul.f32.gmra.mxu0 %v1756
        %v1775 = vpop.f32.mrf.mxu0
        %v1776 = vadd.f32 0.0, %v1775
        %1777 = vdwg.mxu0
        %1778 = vrot.lane.b32.xlu0 %v432, 80
        %v1779 = vpop.permute.xlu0 %1778
        %v1782 = vsel %vm597, %v1710, 0
        %1784 = vmatpush.msra.mxu0 0.0
        %1785 = vmatpush.msra.mxu0 0.0
        %1786 = vmatpush.msra.mxu0 0.0
        %1787 = vmatpush.msra.mxu0 0.0
        %1788 = vmatpush.msra.mxu0 0.0
        %1789 = vmatpush.msra.mxu0 0.0
        %1790 = vmatpush.msra.mxu0 0.0
        %1791 = vmatpush.msra.mxu0 0.0
        %1792 = vmatpush.msra.mxu0 0.0
        %1793 = vmatpush.msra.mxu0 0.0
        %1794 = vmatpush.msra.mxu0 0.0
        %1795 = vmatpush.msra.mxu0 0.0
        %1796 = vmatpush.msra.mxu0 0.0
        %1797 = vmatpush.msra.mxu0 0.0
        %1798 = vmatpush.msra.mxu0 0.0
        %1799 = vmatpush.msra.mxu0 %v1779
        %1800 = vmatmul.f32.gmra.mxu0 %v1782
        %v1801 = vpop.f32.mrf.mxu0
        %v1802 = vadd.f32 0.0, %v1801
        %1803 = vdwg.mxu0
        %1804 = vrot.lane.b32.xlu0 %v435, 80
        %v1805 = vpop.permute.xlu0 %1804
        %v1808 = vsel %vm597, %v1725, 0
        %1810 = vmatpush.msra.mxu0 0.0
        %1811 = vmatpush.msra.mxu0 0.0
        %1812 = vmatpush.msra.mxu0 0.0
        %1813 = vmatpush.msra.mxu0 0.0
        %1814 = vmatpush.msra.mxu0 0.0
        %1815 = vmatpush.msra.mxu0 0.0
        %1816 = vmatpush.msra.mxu0 0.0
        %1817 = vmatpush.msra.mxu0 0.0
        %1818 = vmatpush.msra.mxu0 0.0
        %1819 = vmatpush.msra.mxu0 0.0
        %1820 = vmatpush.msra.mxu0 0.0
        %1821 = vmatpush.msra.mxu0 0.0
        %1822 = vmatpush.msra.mxu0 0.0
        %1823 = vmatpush.msra.mxu0 0.0
        %1824 = vmatpush.msra.mxu0 0.0
        %1825 = vmatpush.msra.mxu0 %v1805
        %1826 = vmatmul.f32.gmra.mxu0 %v1808
        %v1827 = vpop.f32.mrf.mxu0
        %v1828 = vadd.f32 0.0, %v1827
        %1829 = vdwg.mxu0
        %1834 = vrot.lane.b32.xlu0 %v1058, 16
        %v1835 = vpop.permute.xlu0 %1834
        %1836 = vrot.lane.b32.xlu0 %v1084, 16
        %v1837 = vpop.permute.xlu0 %1836
        %1838 = vrot.lane.b32.xlu0 %v1110, 16
        %v1839 = vpop.permute.xlu0 %1838
        %1840 = vrot.lane.b32.xlu0 %v1136, 16
        %v1841 = vpop.permute.xlu0 %1840
        %1850 = vrot.lane.b32.xlu0 %v1410, 32
        %v1851 = vpop.permute.xlu0 %1850
        %1852 = vrot.lane.b32.xlu0 %v1436, 32
        %v1853 = vpop.permute.xlu0 %1852
        %1854 = vrot.lane.b32.xlu0 %v1462, 32
        %v1855 = vpop.permute.xlu0 %1854
        %1856 = vrot.lane.b32.xlu0 %v1488, 32
        %v1857 = vpop.permute.xlu0 %1856
        %1866 = vrot.lane.b32.xlu0 %v1750, 48
        %v1867 = vpop.permute.xlu0 %1866
        %1868 = vrot.lane.b32.xlu0 %v1776, 48
        %v1869 = vpop.permute.xlu0 %1868
        %1870 = vrot.lane.b32.xlu0 %v1802, 48
        %v1871 = vpop.permute.xlu0 %1870
        %1872 = vrot.lane.b32.xlu0 %v1828, 48
        %v1873 = vpop.permute.xlu0 %1872
        %v1878 = vsel %vm270, %v715, %v1835
        %v1879 = vsel %vm270, %v738, %v1837
        %v1880 = vsel %vm270, %v761, %v1839
        %v1881 = vsel %vm270, %v784, %v1841
        %vm1882 = vcmask 261120
        %v1883 = vsel %vm1882, %v1878, %v1851
        %v1884 = vsel %vm1882, %v1879, %v1853
        %v1885 = vsel %vm1882, %v1880, %v1855
        %v1886 = vsel %vm1882, %v1881, %v1857
        %vm1887 = vcmask 392192
        %v1888 = vsel %vm1887, %v1883, %v1867
        %v1889 = vsel %vm1887, %v1884, %v1869
        %v1890 = vsel %vm1887, %v1885, %v1871
        %v1891 = vsel %vm1887, %v1886, %v1873
        %v1893 = vperm.slane %v265, 0
        %v1895 = vadd.f32 %v1888, %v1893
        %v1896 = vadd.f32 %v1889, %v1893
        %v1897 = vadd.f32 %v1890, %v1893
        %v1898 = vadd.f32 %v1891, %v1893
        %vm1899 = vcmp.gt.f32.partialorder %v1895, 0.0
        %vm1900 = vcmp.gt.f32.partialorder %v1896, 0.0
        %vm1901 = vcmp.gt.f32.partialorder %v1897, 0.0
        %vm1902 = vcmp.gt.f32.partialorder %v1898, 0.0
        %v1903 = vmin.f32 %v1895, 0.0
        %v1904 = vmin.f32 %v1896, 0.0
        %v1905 = vmin.f32 %v1897, 0.0
        %v1906 = vmin.f32 %v1898, 0.0
        %v1907 = vmul.f32 %v1903, 1.442695
        %v1908 = vpow.pop %v1907
        %v1909 = vmul.f32 %v1904, 1.442695
        %v1910 = vpow.pop %v1909
        %v1911 = vmul.f32 %v1905, 1.442695
        %v1912 = vpow.pop %v1911
        %v1913 = vmul.f32 %v1906, 1.442695
        %v1914 = vpow.pop %v1913
        %v1915 = vsub.f32 %v1908, 1.0
        %v1916 = vsub.f32 %v1910, 1.0
        %v1917 = vsub.f32 %v1912, 1.0
        %v1918 = vsub.f32 %v1914, 1.0
        %v1919 = vsel %vm1899, %v1895, %v1915
        %v1920 = vsel %vm1900, %v1896, %v1916
        %v1921 = vsel %vm1901, %v1897, %v1917
        %v1922 = vsel %vm1902, %v1898, %v1918
        %v1923 = vld [vmem:[%s4] sm:$0xff]
        %v1924 = vld [vmem:[%s4 + $0x8] sm:$0xff]
        %v1925 = vld [vmem:[%s4 + $0x10] sm:$0xff]
        %v1926 = vld [vmem:[%s4 + $0x18] sm:$0xff]
        %v1927 = vld [vmem:[%s4 + $0x20] sm:$0xff]
        %v1928 = vld [vmem:[%s4 + $0x28] sm:$0xff]
        %v1929 = vld [vmem:[%s4 + $0x30] sm:$0xff]
        %v1930 = vld [vmem:[%s4 + $0x38] sm:$0xff]
        %v1931 = vld [vmem:[%s5] sm:$0x1]
        %v1932 = vmul.f32 %v1919, %v244
        %v1933 = vmul.f32 %v1920, %v244
        %v1934 = vmul.f32 %v1921, %v244
        %v1935 = vmul.f32 %v1922, %v244
        %vm1936 = vcmask 523264
        %v1937 = vsel %vm1936, %v1932, 0.0
        %v1938 = vrot.slane %v1937, 4
        %v1939 = vadd.f32 %v1937, %v1938
        %v1940 = vrot.slane %v1939, 2
        %v1941 = vadd.f32 %v1939, %v1940
        %v1942 = vrot.slane %v1941, 1
        %v1943 = vadd.f32 %v1941, %v1942
        %v1944 = vsel %vm1936, %v1933, 0.0
        %v1945 = vrot.slane %v1944, 4
        %v1946 = vadd.f32 %v1944, %v1945
        %v1947 = vrot.slane %v1946, 2
        %v1948 = vadd.f32 %v1946, %v1947
        %v1949 = vrot.slane %v1948, 1
        %v1950 = vadd.f32 %v1948, %v1949
        %v1951 = vsel %vm1936, %v1934, 0.0
        %v1952 = vrot.slane %v1951, 4
        %v1953 = vadd.f32 %v1951, %v1952
        %v1954 = vrot.slane %v1953, 2
        %v1955 = vadd.f32 %v1953, %v1954
        %v1956 = vrot.slane %v1955, 1
        %v1957 = vadd.f32 %v1955, %v1956
        %v1958 = vsel %vm1936, %v1935, 0.0
        %v1959 = vrot.slane %v1958, 4
        %v1960 = vadd.f32 %v1958, %v1959
        %v1961 = vrot.slane %v1960, 2
        %v1962 = vadd.f32 %v1960, %v1961
        %v1963 = vrot.slane %v1962, 1
        %v1964 = vadd.f32 %v1962, %v1963
        %v1965 = vmul.f32 %v1943, %v299
        %v1966 = vmul.f32 %v1950, %v299
        %v1967 = vmul.f32 %v1957, %v299
        %v1968 = vmul.f32 %v1964, %v299
        %v1969 = vsub.f32 %v1919, %v1965
        %v1970 = vsub.f32 %v1920, %v1966
        %v1971 = vsub.f32 %v1921, %v1967
        %v1972 = vsub.f32 %v1922, %v1968
        %v1973 = vmul.f32 %v1969, %v244
        %v1974 = vmul.f32 %v1970, %v244
        %v1975 = vmul.f32 %v1971, %v244
        %v1976 = vmul.f32 %v1972, %v244
        %v1977 = vmul.f32 %v1973, %v1973
        %v1978 = vmul.f32 %v1974, %v1974
        %v1979 = vmul.f32 %v1975, %v1975
        %v1980 = vmul.f32 %v1976, %v1976
        %v1981 = vsel %vm1936, %v1977, 0.0
        %v1982 = vrot.slane %v1981, 4
        %v1983 = vadd.f32 %v1981, %v1982
        %v1984 = vrot.slane %v1983, 2
        %v1985 = vadd.f32 %v1983, %v1984
        %v1986 = vrot.slane %v1985, 1
        %v1987 = vadd.f32 %v1985, %v1986
        %v1988 = vsel %vm1936, %v1978, 0.0
        %v1989 = vrot.slane %v1988, 4
        %v1990 = vadd.f32 %v1988, %v1989
        %v1991 = vrot.slane %v1990, 2
        %v1992 = vadd.f32 %v1990, %v1991
        %v1993 = vrot.slane %v1992, 1
        %v1994 = vadd.f32 %v1992, %v1993
        %v1995 = vsel %vm1936, %v1979, 0.0
        %v1996 = vrot.slane %v1995, 4
        %v1997 = vadd.f32 %v1995, %v1996
        %v1998 = vrot.slane %v1997, 2
        %v1999 = vadd.f32 %v1997, %v1998
        %v2000 = vrot.slane %v1999, 1
        %v2001 = vadd.f32 %v1999, %v2000
        %v2002 = vsel %vm1936, %v1980, 0.0
        %v2003 = vrot.slane %v2002, 4
        %v2004 = vadd.f32 %v2002, %v2003
        %v2005 = vrot.slane %v2004, 2
        %v2006 = vadd.f32 %v2004, %v2005
        %v2007 = vrot.slane %v2006, 1
        %v2008 = vadd.f32 %v2006, %v2007
        %v2009 = vmul.f32 %v1987, %v299
        %v2010 = vmul.f32 %v1994, %v299
        %v2011 = vmul.f32 %v2001, %v299
        %v2012 = vmul.f32 %v2008, %v299
        %v2013 = vadd.f32 %v2009, 1e-05
        %v2014 = vadd.f32 %v2010, 1e-05
        %v2015 = vadd.f32 %v2011, 1e-05
        %v2016 = vadd.f32 %v2012, 1e-05
        %v2017 = vrsqrt.pop %v2013
        %v2018 = vmul.f32 %v2017, %v2013
        %v2019 = vmul.f32 %v2018, %v2017
        %v2020 = vmul.f32 0.5, %v2019
        %v2021 = vsub.f32 1.5, %v2020
        %v2022 = vmul.f32 %v2017, %v2021
        %vm2023 = vweird.f32 %v2013
        %vm2024 = vweird.f32 %v2017
        %vm2025 = vmor %vm2023, %vm2024
        %v2026 = vsel %vm2025, %v2017, %v2022
        %v2027 = vrsqrt.pop %v2014
        %v2028 = vmul.f32 %v2027, %v2014
        %v2029 = vmul.f32 %v2028, %v2027
        %v2030 = vmul.f32 0.5, %v2029
        %v2031 = vsub.f32 1.5, %v2030
        %v2032 = vmul.f32 %v2027, %v2031
        %vm2033 = vweird.f32 %v2014
        %vm2034 = vweird.f32 %v2027
        %vm2035 = vmor %vm2033, %vm2034
        %v2036 = vsel %vm2035, %v2027, %v2032
        %v2037 = vrsqrt.pop %v2015
        %v2038 = vmul.f32 %v2037, %v2015
        %v2039 = vmul.f32 %v2038, %v2037
        %v2040 = vmul.f32 0.5, %v2039
        %v2041 = vsub.f32 1.5, %v2040
        %v2042 = vmul.f32 %v2037, %v2041
        %vm2043 = vweird.f32 %v2015
        %vm2044 = vweird.f32 %v2037
        %vm2045 = vmor %vm2043, %vm2044
        %v2046 = vsel %vm2045, %v2037, %v2042
        %v2047 = vrsqrt.pop %v2016
        %v2048 = vmul.f32 %v2047, %v2016
        %v2049 = vmul.f32 %v2048, %v2047
        %v2050 = vmul.f32 0.5, %v2049
        %v2051 = vsub.f32 1.5, %v2050
        %v2052 = vmul.f32 %v2047, %v2051
        %vm2053 = vweird.f32 %v2016
        %vm2054 = vweird.f32 %v2047
        %vm2055 = vmor %vm2053, %vm2054
        %v2056 = vsel %vm2055, %v2047, %v2052
        %v2057 = vmul.f32 %v1969, %v2026
        %v2058 = vmul.f32 %v1970, %v2036
        %v2059 = vmul.f32 %v1971, %v2046
        %v2060 = vmul.f32 %v1972, %v2056
        %v2062 = vsel %vm1936, %v2057, 0
        %v2065 = vsel %vm1936, %v2058, 0
        %v2068 = vsel %vm1936, %v2059, 0
        %v2071 = vsel %vm1936, %v2060, 0
        %2073 = vmatpush.msra.mxu0 0.0
        %2074 = vmatpush.msra.mxu0 0.0
        %2075 = vmatpush.msra.mxu0 0.0
        %2076 = vmatpush.msra.mxu0 0.0
        %2077 = vmatpush.msra.mxu0 0.0
        %2078 = vmatpush.msra.mxu0 0.0
        %2079 = vmatpush.msra.mxu0 0.0
        %2080 = vmatpush.msra.mxu0 0.0
        %2081 = vmatpush.msra.mxu0 %v1930
        %2082 = vmatpush.msra.mxu0 %v1929
        %2083 = vmatpush.msra.mxu0 %v1928
        %2084 = vmatpush.msra.mxu0 %v1927
        %2085 = vmatpush.msra.mxu0 %v1926
        %2086 = vmatpush.msra.mxu0 %v1925
        %2087 = vmatpush.msra.mxu0 %v1924
        %2088 = vmatpush.msra.mxu0 %v1923
        %2089 = vmatmul.f32.gmra.mxu0 %v2062
        %v2090 = vpop.f32.mrf.mxu0
        %v2091 = vadd.f32 0.0, %v2090
        %2092 = vmatmul.f32.gmra.mxu0 %v2065
        %v2093 = vpop.f32.mrf.mxu0
        %v2094 = vadd.f32 0.0, %v2093
        %2095 = vmatmul.f32.gmra.mxu0 %v2068
        %v2096 = vpop.f32.mrf.mxu0
        %v2097 = vadd.f32 0.0, %v2096
        %2098 = vmatmul.f32.gmra.mxu0 %v2071
        %v2099 = vpop.f32.mrf.mxu0
        %v2100 = vadd.f32 0.0, %v2099
        %2101 = vdwg.mxu0
        %2106 = vrot.lane.b32.xlu0 %v2091, 112
        %v2107 = vpop.permute.xlu0 %2106
        %2108 = vrot.lane.b32.xlu0 %v2094, 112
        %v2109 = vpop.permute.xlu0 %2108
        %2110 = vrot.lane.b32.xlu0 %v2097, 112
        %v2111 = vpop.permute.xlu0 %2110
        %2112 = vrot.lane.b32.xlu0 %v2100, 112
        %v2113 = vpop.permute.xlu0 %2112
        %v2118 = vsel %vm453, %v2107, 1.0
        %v2119 = vsel %vm453, %v2109, 1.0
        %v2120 = vsel %vm453, %v2111, 1.0
        %v2121 = vsel %vm453, %v2113, 1.0
        %v2122 = vsel %vm453, 1.0, %v2107
        %v2123 = vsel %vm453, 1.0, %v2109
        %v2124 = vsel %vm453, 1.0, %v2111
        %v2125 = vsel %vm453, 1.0, %v2113
        %v2127 = vsel %vm474, %v2118, 0
        %v2130 = vsel %vm474, %v2122, 0
        %2132 = vmatpush.xpose.msra.mxu0 0.0
        %2133 = vmatpush.xpose.msra.mxu0 0.0
        %2134 = vmatpush.xpose.msra.mxu0 0.0
        %2135 = vmatpush.xpose.msra.mxu0 0.0
        %2136 = vmatpush.xpose.msra.mxu0 0.0
        %2137 = vmatpush.xpose.msra.mxu0 0.0
        %2138 = vmatpush.xpose.msra.mxu0 0.0
        %2139 = vmatpush.xpose.msra.mxu0 0.0
        %2140 = vmatpush.xpose.msra.mxu0 0.0
        %2141 = vmatpush.xpose.msra.mxu0 0.0
        %2142 = vmatpush.xpose.msra.mxu0 0.0
        %2143 = vmatpush.xpose.msra.mxu0 0.0
        %2144 = vmatpush.xpose.msra.mxu0 0.0
        %2145 = vmatpush.xpose.msra.mxu0 0.0
        %2146 = vmatpush.xpose.msra.mxu0 0.0
        %2147 = vmatpush.xpose.msra.mxu0 %v2130
        %2148 = vmatmul.f32.gmra.mxu0 %v2127
        %v2149 = vpop.f32.mrf.mxu0
        %v2150 = vadd.f32 0.0, %v2149
        %2151 = vdwg.mxu0
        %v2153 = vsel %vm474, %v2119, 0
        %v2156 = vsel %vm474, %v2123, 0
        %2158 = vmatpush.xpose.msra.mxu0 0.0
        %2159 = vmatpush.xpose.msra.mxu0 0.0
        %2160 = vmatpush.xpose.msra.mxu0 0.0
        %2161 = vmatpush.xpose.msra.mxu0 0.0
        %2162 = vmatpush.xpose.msra.mxu0 0.0
        %2163 = vmatpush.xpose.msra.mxu0 0.0
        %2164 = vmatpush.xpose.msra.mxu0 0.0
        %2165 = vmatpush.xpose.msra.mxu0 0.0
        %2166 = vmatpush.xpose.msra.mxu0 0.0
        %2167 = vmatpush.xpose.msra.mxu0 0.0
        %2168 = vmatpush.xpose.msra.mxu0 0.0
        %2169 = vmatpush.xpose.msra.mxu0 0.0
        %2170 = vmatpush.xpose.msra.mxu0 0.0
        %2171 = vmatpush.xpose.msra.mxu0 0.0
        %2172 = vmatpush.xpose.msra.mxu0 0.0
        %2173 = vmatpush.xpose.msra.mxu0 %v2156
        %2174 = vmatmul.f32.gmra.mxu0 %v2153
        %v2175 = vpop.f32.mrf.mxu0
        %v2176 = vadd.f32 0.0, %v2175
        %2177 = vdwg.mxu0
        %v2179 = vsel %vm474, %v2120, 0
        %v2182 = vsel %vm474, %v2124, 0
        %2184 = vmatpush.xpose.msra.mxu0 0.0
        %2185 = vmatpush.xpose.msra.mxu0 0.0
        %2186 = vmatpush.xpose.msra.mxu0 0.0
        %2187 = vmatpush.xpose.msra.mxu0 0.0
        %2188 = vmatpush.xpose.msra.mxu0 0.0
        %2189 = vmatpush.xpose.msra.mxu0 0.0
        %2190 = vmatpush.xpose.msra.mxu0 0.0
        %2191 = vmatpush.xpose.msra.mxu0 0.0
        %2192 = vmatpush.xpose.msra.mxu0 0.0
        %2193 = vmatpush.xpose.msra.mxu0 0.0
        %2194 = vmatpush.xpose.msra.mxu0 0.0
        %2195 = vmatpush.xpose.msra.mxu0 0.0
        %2196 = vmatpush.xpose.msra.mxu0 0.0
        %2197 = vmatpush.xpose.msra.mxu0 0.0
        %2198 = vmatpush.xpose.msra.mxu0 0.0
        %2199 = vmatpush.xpose.msra.mxu0 %v2182
        %2200 = vmatmul.f32.gmra.mxu0 %v2179
        %v2201 = vpop.f32.mrf.mxu0
        %v2202 = vadd.f32 0.0, %v2201
        %2203 = vdwg.mxu0
        %v2205 = vsel %vm474, %v2121, 0
        %v2208 = vsel %vm474, %v2125, 0
        %2210 = vmatpush.xpose.msra.mxu0 0.0
        %2211 = vmatpush.xpose.msra.mxu0 0.0
        %2212 = vmatpush.xpose.msra.mxu0 0.0
        %2213 = vmatpush.xpose.msra.mxu0 0.0
        %2214 = vmatpush.xpose.msra.mxu0 0.0
        %2215 = vmatpush.xpose.msra.mxu0 0.0
        %2216 = vmatpush.xpose.msra.mxu0 0.0
        %2217 = vmatpush.xpose.msra.mxu0 0.0
        %2218 = vmatpush.xpose.msra.mxu0 0.0
        %2219 = vmatpush.xpose.msra.mxu0 0.0
        %2220 = vmatpush.xpose.msra.mxu0 0.0
        %2221 = vmatpush.xpose.msra.mxu0 0.0
        %2222 = vmatpush.xpose.msra.mxu0 0.0
        %2223 = vmatpush.xpose.msra.mxu0 0.0
        %2224 = vmatpush.xpose.msra.mxu0 0.0
        %2225 = vmatpush.xpose.msra.mxu0 %v2208
        %2226 = vmatmul.f32.gmra.mxu0 %v2205
        %v2227 = vpop.f32.mrf.mxu0
        %v2228 = vadd.f32 0.0, %v2227
        %2229 = vdwg.mxu0
        %vm2230 = vcmp.ge.f32.partialorder %v2150, 0.0
        %vm2231 = vcmp.ge.f32.partialorder %v2176, 0.0
        %vm2232 = vcmp.ge.f32.partialorder %v2202, 0.0
        %vm2233 = vcmp.ge.f32.partialorder %v2228, 0.0
        %v2234 = vmul.f32 %v2150, 0.2
        %v2235 = vmul.f32 %v2176, 0.2
        %v2236 = vmul.f32 %v2202, 0.2
        %v2237 = vmul.f32 %v2228, 0.2
        %v2238 = vsel %vm2230, %v2150, %v2234
        %v2239 = vsel %vm2231, %v2176, %v2235
        %v2240 = vsel %vm2232, %v2202, %v2236
        %v2241 = vsel %vm2233, %v2228, %v2237
        %v2242 = vsel %vm592, %v2238, -1e+30
        %v2243 = vsel %vm592, %v2239, -1e+30
        %v2244 = vsel %vm592, %v2240, -1e+30
        %v2245 = vsel %vm592, %v2241, -1e+30
        %v2246 = vsel %vm597, %v2242, -inf
        %2247 = vmax.xlane.f32.xlu0 %v2246
        %v2248 = vpop.xlane.xlu0 %2247
        %v2249 = vsel %vm597, %v2243, -inf
        %2250 = vmax.xlane.f32.xlu0 %v2249
        %v2251 = vpop.xlane.xlu0 %2250
        %v2252 = vsel %vm597, %v2244, -inf
        %2253 = vmax.xlane.f32.xlu0 %v2252
        %v2254 = vpop.xlane.xlu0 %2253
        %v2255 = vsel %vm597, %v2245, -inf
        %2256 = vmax.xlane.f32.xlu0 %v2255
        %v2257 = vpop.xlane.xlu0 %2256
        %v2258 = vsub.f32 %v2242, %v2248
        %v2259 = vsub.f32 %v2243, %v2251
        %v2260 = vsub.f32 %v2244, %v2254
        %v2261 = vsub.f32 %v2245, %v2257
        %v2262 = vmul.f32 %v2258, 1.442695
        %v2263 = vpow.pop %v2262
        %v2264 = vmul.f32 %v2259, 1.442695
        %v2265 = vpow.pop %v2264
        %v2266 = vmul.f32 %v2260, 1.442695
        %v2267 = vpow.pop %v2266
        %v2268 = vmul.f32 %v2261, 1.442695
        %v2269 = vpow.pop %v2268
        %v2270 = vsel %vm597, %v2263, 0.0
        %2271 = vadd.xlane.f32.xlu0 %v2270
        %v2272 = vpop.xlane.xlu0 %2271
        %v2273 = vsel %vm597, %v2265, 0.0
        %2274 = vadd.xlane.f32.xlu0 %v2273
        %v2275 = vpop.xlane.xlu0 %2274
        %v2276 = vsel %vm597, %v2267, 0.0
        %2277 = vadd.xlane.f32.xlu0 %v2276
        %v2278 = vpop.xlane.xlu0 %2277
        %v2279 = vsel %vm597, %v2269, 0.0
        %2280 = vadd.xlane.f32.xlu0 %v2279
        %v2281 = vpop.xlane.xlu0 %2280
        %v2282 = vrcp.pop %v2272
        %v2283 = vmul.f32 %v2272, %v2282
        %v2284 = vsub.f32 1.0, %v2283
        %v2285 = vmul.f32 %v2282, %v2284
        %v2286 = vadd.f32 %v2282, %v2285
        %vm2287 = vweird.f32 %v2272
        %vm2288 = vweird.f32 %v2282
        %vm2289 = vmor %vm2287, %vm2288
        %v2290 = vsel %vm2289, %v2282, %v2286
        %v2291 = vand.u32 2147483647, %v2272
        %vm2292 = vcmp.eq.f32.partialorder %v2291, 8.507059e+37
        %v2293 = vand.u32 %v2272, 2147483648
        %v2294 = vor.u32 1.1754944e-38, %v2293
        %v2295 = vsel %vm2292, %v2294, %v2290
        %v2296 = vmul.f32 %v2263, %v2295
        %v2297 = vrcp.pop %v2275
        %v2298 = vmul.f32 %v2275, %v2297
        %v2299 = vsub.f32 1.0, %v2298
        %v2300 = vmul.f32 %v2297, %v2299
        %v2301 = vadd.f32 %v2297, %v2300
        %vm2302 = vweird.f32 %v2275
        %vm2303 = vweird.f32 %v2297
        %vm2304 = vmor %vm2302, %vm2303
        %v2305 = vsel %vm2304, %v2297, %v2301
        %v2306 = vand.u32 2147483647, %v2275
        %vm2307 = vcmp.eq.f32.partialorder %v2306, 8.507059e+37
        %v2308 = vand.u32 %v2275, 2147483648
        %v2309 = vor.u32 1.1754944e-38, %v2308
        %v2310 = vsel %vm2307, %v2309, %v2305
        %v2311 = vmul.f32 %v2265, %v2310
        %v2312 = vrcp.pop %v2278
        %v2313 = vmul.f32 %v2278, %v2312
        %v2314 = vsub.f32 1.0, %v2313
        %v2315 = vmul.f32 %v2312, %v2314
        %v2316 = vadd.f32 %v2312, %v2315
        %vm2317 = vweird.f32 %v2278
        %vm2318 = vweird.f32 %v2312
        %vm2319 = vmor %vm2317, %vm2318
        %v2320 = vsel %vm2319, %v2312, %v2316
        %v2321 = vand.u32 2147483647, %v2278
        %vm2322 = vcmp.eq.f32.partialorder %v2321, 8.507059e+37
        %v2323 = vand.u32 %v2278, 2147483648
        %v2324 = vor.u32 1.1754944e-38, %v2323
        %v2325 = vsel %vm2322, %v2324, %v2320
        %v2326 = vmul.f32 %v2267, %v2325
        %v2327 = vrcp.pop %v2281
        %v2328 = vmul.f32 %v2281, %v2327
        %v2329 = vsub.f32 1.0, %v2328
        %v2330 = vmul.f32 %v2327, %v2329
        %v2331 = vadd.f32 %v2327, %v2330
        %vm2332 = vweird.f32 %v2281
        %vm2333 = vweird.f32 %v2327
        %vm2334 = vmor %vm2332, %vm2333
        %v2335 = vsel %vm2334, %v2327, %v2331
        %v2336 = vand.u32 2147483647, %v2281
        %vm2337 = vcmp.eq.f32.partialorder %v2336, 8.507059e+37
        %v2338 = vand.u32 %v2281, 2147483648
        %v2339 = vor.u32 1.1754944e-38, %v2338
        %v2340 = vsel %vm2337, %v2339, %v2335
        %v2341 = vmul.f32 %v2269, %v2340
        %v2343 = vperm.slane %v1931, 0
        %v2346 = vsel %vm597, %v2296, 0
        %2348 = vmatpush.msra.mxu0 0.0
        %2349 = vmatpush.msra.mxu0 0.0
        %2350 = vmatpush.msra.mxu0 0.0
        %2351 = vmatpush.msra.mxu0 0.0
        %2352 = vmatpush.msra.mxu0 0.0
        %2353 = vmatpush.msra.mxu0 0.0
        %2354 = vmatpush.msra.mxu0 0.0
        %2355 = vmatpush.msra.mxu0 0.0
        %2356 = vmatpush.msra.mxu0 0.0
        %2357 = vmatpush.msra.mxu0 0.0
        %2358 = vmatpush.msra.mxu0 0.0
        %2359 = vmatpush.msra.mxu0 0.0
        %2360 = vmatpush.msra.mxu0 0.0
        %2361 = vmatpush.msra.mxu0 0.0
        %2362 = vmatpush.msra.mxu0 0.0
        %2363 = vmatpush.msra.mxu0 %v2091
        %2364 = vmatmul.f32.gmra.mxu0 %v2346
        %v2365 = vpop.f32.mrf.mxu0
        %v2366 = vadd.f32 %v2343, %v2365
        %2367 = vdwg.mxu0
        %v2369 = vsel %vm597, %v2311, 0
        %2371 = vmatpush.msra.mxu0 0.0
        %2372 = vmatpush.msra.mxu0 0.0
        %2373 = vmatpush.msra.mxu0 0.0
        %2374 = vmatpush.msra.mxu0 0.0
        %2375 = vmatpush.msra.mxu0 0.0
        %2376 = vmatpush.msra.mxu0 0.0
        %2377 = vmatpush.msra.mxu0 0.0
        %2378 = vmatpush.msra.mxu0 0.0
        %2379 = vmatpush.msra.mxu0 0.0
        %2380 = vmatpush.msra.mxu0 0.0
        %2381 = vmatpush.msra.mxu0 0.0
        %2382 = vmatpush.msra.mxu0 0.0
        %2383 = vmatpush.msra.mxu0 0.0
        %2384 = vmatpush.msra.mxu0 0.0
        %2385 = vmatpush.msra.mxu0 0.0
        %2386 = vmatpush.msra.mxu0 %v2094
        %2387 = vmatmul.f32.gmra.mxu0 %v2369
        %v2388 = vpop.f32.mrf.mxu0
        %v2389 = vadd.f32 %v2343, %v2388
        %2390 = vdwg.mxu0
        %v2392 = vsel %vm597, %v2326, 0
        %2394 = vmatpush.msra.mxu0 0.0
        %2395 = vmatpush.msra.mxu0 0.0
        %2396 = vmatpush.msra.mxu0 0.0
        %2397 = vmatpush.msra.mxu0 0.0
        %2398 = vmatpush.msra.mxu0 0.0
        %2399 = vmatpush.msra.mxu0 0.0
        %2400 = vmatpush.msra.mxu0 0.0
        %2401 = vmatpush.msra.mxu0 0.0
        %2402 = vmatpush.msra.mxu0 0.0
        %2403 = vmatpush.msra.mxu0 0.0
        %2404 = vmatpush.msra.mxu0 0.0
        %2405 = vmatpush.msra.mxu0 0.0
        %2406 = vmatpush.msra.mxu0 0.0
        %2407 = vmatpush.msra.mxu0 0.0
        %2408 = vmatpush.msra.mxu0 0.0
        %2409 = vmatpush.msra.mxu0 %v2097
        %2410 = vmatmul.f32.gmra.mxu0 %v2392
        %v2411 = vpop.f32.mrf.mxu0
        %v2412 = vadd.f32 %v2343, %v2411
        %2413 = vdwg.mxu0
        %v2415 = vsel %vm597, %v2341, 0
        %2417 = vmatpush.msra.mxu0 0.0
        %2418 = vmatpush.msra.mxu0 0.0
        %2419 = vmatpush.msra.mxu0 0.0
        %2420 = vmatpush.msra.mxu0 0.0
        %2421 = vmatpush.msra.mxu0 0.0
        %2422 = vmatpush.msra.mxu0 0.0
        %2423 = vmatpush.msra.mxu0 0.0
        %2424 = vmatpush.msra.mxu0 0.0
        %2425 = vmatpush.msra.mxu0 0.0
        %2426 = vmatpush.msra.mxu0 0.0
        %2427 = vmatpush.msra.mxu0 0.0
        %2428 = vmatpush.msra.mxu0 0.0
        %2429 = vmatpush.msra.mxu0 0.0
        %2430 = vmatpush.msra.mxu0 0.0
        %2431 = vmatpush.msra.mxu0 0.0
        %2432 = vmatpush.msra.mxu0 %v2100
        %2433 = vmatmul.f32.gmra.mxu0 %v2415
        %v2434 = vpop.f32.mrf.mxu0
        %v2435 = vadd.f32 %v2343, %v2434
        %2436 = vdwg.mxu0
        %2437 = vst.msk [vmem:[%s226] sm:$0xff] %vm270, %v2366
        %2438 = vst.msk [vmem:[%s226 + $0x8] sm:$0xff] %vm270, %v2389
        %2439 = vst.msk [vmem:[%s226 + $0x10] sm:$0xff] %vm270, %v2412
        %2440 = vst.msk [vmem:[%s226 + $0x18] sm:$0xff] %vm270, %v2435
        %s2441 = sand.u32 %s146, 1
        %s2442 = scalar_lea.sflag [#allocation5], %s2441
        %s2443 = sand.u32 %s146, 1
        %s2444 = smul.addr %s2443, 32
        %s2445 = scalar_lea.vmem [#allocation4], %s2444
        // Predicated region
        $region41: #{tpu_custom_call.1} parent=39 // pred_check
          %p2446 = pneg %p156
        $region42: #{tpu_custom_call.1} parent=39 // pred_check_branch
          %2448 = sbr.rel (%p2446) target = $region44
        $region43: #{tpu_custom_call.1} parent=39 // pred_region
          %2450 = vsyncadd %s2442, 0
          %s2451 = smul.addr %s28, 4
          %s2452 = smul.addr %s2451, 8
          %s2453 = scalar_lea.hbm %s6, %s2452
          %s2454 = sshll.u32 %s2445, 4
          %s2455 = int_to_ptr.vmem [resolvable:$true] %s2454
          %s2456 = sshll.u32 %s2453, 4
          %s2457 = int_to_ptr.hbm [resolvable:$true] %s2456
          %2462 = dma.vmem_to_hbm [thread:$0]  %s2455, 512, %s2457, %s2442, 128, 128, 8
        $region44: #{tpu_custom_call.1} parent=39 // pred_fallthru
          _
      $region40: #{tpu_custom_call.1} parent=5 // pred_fallthru
        _
      %p2463 = scmp.le.s32.totalorder 2, %s23
      // Predicated region
      $region45: #{tpu_custom_call.1} parent=5 // pred_check
        %p2464 = pneg %p2463
      $region46: #{tpu_custom_call.1} parent=5 // pred_check_branch
        %2466 = sbr.rel (%p2464) target = $region48
      $region47: #{tpu_custom_call.1} parent=5 // pred_region
        %s2467 = ssub.s32 %s23, 2
        // Predicated region
        $region49: #{tpu_custom_call.1} parent=47 // pred_check
          %p2468 = pneg %p162
        $region50: #{tpu_custom_call.1} parent=47 // pred_check_branch
          %2470 = sbr.rel (%p2468) target = $region52
        $region51: #{tpu_custom_call.1} parent=47 // pred_region
          %s2471 = sand.u32 %s147, 1
          %s2472 = scalar_lea.sflag [#allocation5], %s2471
          %s2473 = sand.u32 %s147, 1
          %s2474 = smul.addr %s2473, 32
          %s2475 = scalar_lea.vmem [#allocation4], %s2474
          %2477 = dma.done %s2472, 512
        $region52: #{tpu_custom_call.1} parent=47 // pred_fallthru
          _
      $region48: #{tpu_custom_call.1} parent=5 // pred_fallthru
        _
    $region6: #{tpu_custom_call.1} parent=1 // loop_footer
      %s27 = sadd.s32 1, %s23
    $region7: #{tpu_custom_call.1} parent=1 // loop_footer_branch
      %22 = sbr.rel target = $region3
    $region8: #{tpu_custom_call.1} parent=1 // loop_exit
      _
    %2478 = vsyncpa [#allocation5], 1
    %s2479 = scalar_lea.sflag [#allocation5], 1
    %2480 = vsyncpa %s2479, 1

</llo_original>
